<compile_context>
chip_gen: v7x
topology: tpu7x:2x2x1
jax: 0.10.0
libtpu: 0.0.40
codegen_flags: <defaults>
</compile_context>

<pallas_src>
import jax
import jax.numpy as jnp
from jax.experimental import pallas as pl
from jax.experimental.pallas import tpu as pltpu


# ----------------------------------------------------------------------------- kernel ----
def _fused_encoder_kernel(x_ref, w1_ref, b1_ref, wh_ref, bh_ref, wo_ref, bo_ref,
                          s_out_ref, a_out_ref):
    half = s_out_ref.shape[-1]

    # Layer 1: [B, state+action] @ block-diag W1 -> [B, 2*Hp]   (f32 accumulation on MXU)
    h = jnp.dot(x_ref[...], w1_ref[...], preferred_element_type=jnp.float32)
    h = jnp.maximum(h + b1_ref[...], 0.0)

    # Hidden layer: block-diag [2*Hp, 2*Hp]
    h = jnp.dot(h.astype(wh_ref.dtype), wh_ref[...], preferred_element_type=jnp.float32)
    h = jnp.maximum(h + bh_ref[...], 0.0)

    # Output layer: block-diag [2*Hp, out_dim]; columns [:half] = state head (identity),
    # columns [half:] = action head (tanh). Both halves are 128-lane aligned -> unmasked vst.
    y = jnp.dot(h.astype(wo_ref.dtype), wo_ref[...], preferred_element_type=jnp.float32)
    y = y + bo_ref[...]
    s_out_ref[...] = y[:, :half].astype(s_out_ref.dtype)
    a_out_ref[...] = jnp.tanh(y[:, half:]).astype(a_out_ref.dtype)


# --------------------------------------------------------------------------- packing -----
def _cdiv(a, b):
    return -(-a // b)


def _round_up(x, m):
    return _cdiv(x, m) * m


def _block_diag(a, b):
    out = jnp.zeros((a.shape[0] + b.shape[0], a.shape[1] + b.shape[1]), a.dtype)
    out = out.at[: a.shape[0], : a.shape[1]].set(a)
    out = out.at[a.shape[0]:, a.shape[1]:].set(b)
    return out


def pack_params(raw, matmul_dtype=jnp.bfloat16):
    """Pack per-branch [in, out] weights into fused block-diagonal matrices.

    Each branch's hidden width is zero-padded up to a multiple of 128 (e.g. the PyTorch
    default 200 -> 256) so every tile is unmasked. Weights are cast to `matmul_dtype`
    (bf16: 2x MXU throughput on v6e/v7x, halved weight DMA); biases stay f32 since all
    post-accumulation elementwise math is f32.
    """
    (ws_in, bs_in, ws_h, bs_h, ws_out, bs_out,
     wa_in, ba_in, wa_h, ba_h, wa_out, ba_out) = raw

    def pad_branch(w_in, b_in, w_h, b_h, w_out, b_out):
        h = w_in.shape[1]
        hp = _round_up(h, 128)
        return (jnp.pad(w_in, ((0, 0), (0, hp - h))),
                jnp.pad(b_in, (0, hp - h)),
                jnp.pad(w_h, ((0, hp - h), (0, hp - h))),
                jnp.pad(b_h, (0, hp - h)),
                jnp.pad(w_out, ((0, hp - h), (0, 0))),
                b_out)

    s = pad_branch(ws_in, bs_in, ws_h, bs_h, ws_out, bs_out)
    a = pad_branch(wa_in, ba_in, wa_h, ba_h, wa_out, ba_out)

    w1 = _block_diag(s[0], a[0]).astype(matmul_dtype)           # [state+action, 2*Hp]
    b1 = jnp.concatenate([s[1], a[1]])[None, :].astype(jnp.float32)
    wh = _block_diag(s[2], a[2]).astype(matmul_dtype)           # [2*Hp, 2*Hp]
    bh = jnp.concatenate([s[3], a[3]])[None, :].astype(jnp.float32)
    wo = _block_diag(s[4], a[4]).astype(matmul_dtype)           # [2*Hp, out_dim]
    bo = jnp.concatenate([s[5], a[5]])[None, :].astype(jnp.float32)
    return (w1, b1, wh, bh, wo, bo)


# --------------------------------------------------------------------------- forward -----
def _choose_block(batch, max_block=1024):
    """Largest batch tile (amortizes the ~0.35us per-grid-step cost and DMA setup) while
    (a) keeping >= 2 grid steps so the 'parallel' batch axis shards across v7x's two
    TensorCores, and (b) staying comfortably under the default scoped-VMEM limit
    (even v5e's 16 MiB) at tile <= 1024 rows."""
    if batch <= 8:
        return 8
    n = max(2, _cdiv(batch, max_block))
    return _round_up(_cdiv(batch, n), 8)


@jax.jit
def state_action_encoder_forward(s_t, a_t, packed):
    """s_t: [B, state_sz] f32, a_t: [B, action_sz] f32 -> (state_embb, action_embb)."""
    w1, b1, wh, bh, wo, bo = packed
    B = s_t.shape[0]
    half = wo.shape[1] // 2
    in_dim = s_t.shape[1] + a_t.shape[1]

    # The fused first layer consumes the concatenated [B, state_sz+action_sz] features.
    x = jnp.concatenate([s_t, a_t], axis=-1).astype(w1.dtype)

    block_b = _choose_block(B)
    n_blocks = _cdiv(B, block_b)
    bp = n_blocks * block_b
    if bp != B:
        x = jnp.pad(x, ((0, bp - B), (0, 0)))

    batched = lambda i: (i, 0)      # stream activations / outputs along batch
    resident = lambda i: (0, 0)     # weights & biases stay VMEM-resident across tiles

    weight_args = (w1, b1, wh, bh, wo, bo)
    in_specs = [pl.BlockSpec((block_b, in_dim), batched)] + [
        pl.BlockSpec(w.shape, resident) for w in weight_args
    ]

    s_embb, a_embb = pl.pallas_call(
        _fused_encoder_kernel,
        grid=(n_blocks,),
        in_specs=in_specs,
        out_specs=(pl.BlockSpec((block_b, half), batched),
                   pl.BlockSpec((block_b, half), batched)),
        out_shape=(jax.ShapeDtypeStruct((bp, half), jnp.float32),
                   jax.ShapeDtypeStruct((bp, half), jnp.float32)),
        compiler_params=pltpu.CompilerParams(
            dimension_semantics=("parallel",),   # batch tiles shard across TCs on v7x
        ),
    )(x, *weight_args)

    if bp != B:
        s_embb, a_embb = s_embb[:B], a_embb[:B]
    return s_embb, a_embb


# ---------------------------------------------------------------- params & reference -----
def init_raw_params(key, state_sz, action_sz, hidden_dim, out_dim):
    """Synthetic per-branch params: weights [in, out], biases [out] (== PyTorch W.T).
    # TODO(synk): exact torch nn.Linear init / trained state_dict loading not replicated;
    # synthetic random parameters are used instead."""
    half = out_dim // 2
    ks = jax.random.split(key, 12)
    w = lambda k, shp: 0.1 * jax.random.normal(k, shp, jnp.float32)
    return (
        w(ks[0], (state_sz, hidden_dim)),  w(ks[1], (hidden_dim,)),
        w(ks[2], (hidden_dim, hidden_dim)), w(ks[3], (hidden_dim,)),
        w(ks[4], (hidden_dim, half)),      w(ks[5], (half,)),
        w(ks[6], (action_sz, hidden_dim)), w(ks[7], (hidden_dim,)),
        w(ks[8], (hidden_dim, hidden_dim)), w(ks[9], (hidden_dim,)),
        w(ks[10], (hidden_dim, half)),     w(ks[11], (half,)),
    )


def reference_forward(s_t, a_t, raw):
    """Pure-JAX f32 reference matching the PyTorch module semantics."""
    (ws_in, bs_in, ws_h, bs_h, ws_out, bs_out,
     wa_in, ba_in, wa_h, ba_h, wa_out, ba_out) = raw
    hs = jnp.maximum(s_t @ ws_in + bs_in, 0.0)
    hs = jnp.maximum(hs @ ws_h + bs_h, 0.0)
    s_embb = hs @ ws_out + bs_out                 # identity output activation
    ha = jnp.maximum(a_t @ wa_in + ba_in, 0.0)
    ha = jnp.maximum(ha @ wa_h + ba_h, 0.0)
    a_embb = jnp.tanh(ha @ wa_out + ba_out)       # tanh output activation
    return s_embb, a_embb


# ------------------------------------------------------------------------------ main -----
if __name__ == "__main__":
    # Module defaults: state_sz=5, action_sz=1, hidden_dim=200, out_dim=256 (128 per head).
    state_sz, action_sz = 5, 1
    hidden_dim = 200          # zero-padded to 256 per branch inside pack_params
    out_dim = 256
    batch = 256               # -> 2 batch tiles of 128 rows

    key = jax.random.PRNGKey(0)
    k_s, k_a, k_p = jax.random.split(key, 3)
    s_t = jax.random.normal(k_s, (batch, state_sz), jnp.float32)
    a_t = jax.random.normal(k_a, (batch, action_sz), jnp.float32)

    raw = init_raw_params(k_p, state_sz, action_sz, hidden_dim, out_dim)
    packed = pack_params(raw)

    s_embb, a_embb = state_action_encoder_forward(s_t, a_t, packed)
    jax.block_until_ready((s_embb, a_embb))

    s_ref, a_ref = reference_forward(s_t, a_t, raw)
    assert s_embb.shape == (batch, out_dim // 2)
    assert a_embb.shape == (batch, out_dim // 2)
    # bf16 matmuls (f32 accumulation) vs f32 reference -> modest tolerance.
    assert jnp.allclose(s_embb, s_ref, atol=3e-2, rtol=3e-2), \
        float(jnp.max(jnp.abs(s_embb - s_ref)))
    assert jnp.allclose(a_embb, a_ref, atol=3e-2, rtol=3e-2), \
        float(jnp.max(jnp.abs(a_embb - a_ref)))

    print("KERNEL_OK")
</pallas_src>

<mosaic_0001>
module attributes {stable_mosaic.version = 11 : i64} {
  func.func @_fused_encoder_kernel(%arg0: i32, %arg1: memref<128x6xbf16, #tpu.memory_space<vmem>>, %arg2: memref<6x512xbf16, #tpu.memory_space<vmem>>, %arg3: memref<1x512xf32, #tpu.memory_space<vmem>>, %arg4: memref<512x512xbf16, #tpu.memory_space<vmem>>, %arg5: memref<1x512xf32, #tpu.memory_space<vmem>>, %arg6: memref<512x256xbf16, #tpu.memory_space<vmem>>, %arg7: memref<1x256xf32, #tpu.memory_space<vmem>>, %arg8: memref<128x128xf32, #tpu.memory_space<vmem>>, %arg9: memref<128x128xf32, #tpu.memory_space<vmem>>) attributes {dimension_semantics = [#tpu.dimension_semantics<parallel>], iteration_bounds = array<i64: 2>, scalar_prefetch = 0 : i64, scratch_operands = 0 : i64, tpu.core_type = #tpu.core_type<tc>, window_params = [{transform_indices = @transform_0, window_bounds = array<i64: 128, 6>}, {pipeline_mode = #tpu.pipeline_mode<synchronous>, transform_indices = @transform_1, window_bounds = array<i64: 6, 512>}, {pipeline_mode = #tpu.pipeline_mode<synchronous>, transform_indices = @transform_2, window_bounds = array<i64: 1, 512>}, {pipeline_mode = #tpu.pipeline_mode<synchronous>, transform_indices = @transform_3, window_bounds = array<i64: 512, 512>}, {pipeline_mode = #tpu.pipeline_mode<synchronous>, transform_indices = @transform_4, window_bounds = array<i64: 1, 512>}, {pipeline_mode = #tpu.pipeline_mode<synchronous>, transform_indices = @transform_5, window_bounds = array<i64: 512, 256>}, {pipeline_mode = #tpu.pipeline_mode<synchronous>, transform_indices = @transform_6, window_bounds = array<i64: 1, 256>}, {transform_indices = @transform_7, window_bounds = array<i64: 128, 128>}, {transform_indices = @transform_8, window_bounds = array<i64: 128, 128>}]} {
    %c0 = arith.constant 0 : index
    %c0_0 = arith.constant 0 : index
    %0 = vector.load %arg1[%c0, %c0_0] : memref<128x6xbf16, #tpu.memory_space<vmem>>, vector<128x6xbf16>
    %c0_1 = arith.constant 0 : index
    %c0_2 = arith.constant 0 : index
    %1 = vector.load %arg2[%c0_1, %c0_2] : memref<6x512xbf16, #tpu.memory_space<vmem>>, vector<6x512xbf16>
    %cst = arith.constant dense<0.000000e+00> : vector<128x512xf32>
    %2 = tpu.matmul %0, %1, %cst {dimension_numbers = #tpu.dot_dimension_numbers<[1], [0], [0], [1], [0, 0, 1, 1], [], []>} : vector<128x6xbf16>, vector<6x512xbf16>, vector<128x512xf32> -> vector<128x512xf32>
    %c0_3 = arith.constant 0 : index
    %c0_4 = arith.constant 0 : index
    %3 = vector.load %arg3[%c0_3, %c0_4] : memref<1x512xf32, #tpu.memory_space<vmem>>, vector<1x512xf32>
    %4 = vector.broadcast %3 : vector<1x512xf32> to vector<128x512xf32>
    %5 = arith.addf %2, %4 : vector<128x512xf32>
    %cst_5 = arith.constant 0.000000e+00 : f32
    %6 = vector.broadcast %cst_5 : f32 to vector<128x512xf32>
    %7 = arith.maximumf %5, %6 : vector<128x512xf32>
    %8 = arith.truncf %7 : vector<128x512xf32> to vector<128x512xbf16>
    %c0_6 = arith.constant 0 : index
    %c0_7 = arith.constant 0 : index
    %9 = vector.load %arg4[%c0_6, %c0_7] : memref<512x512xbf16, #tpu.memory_space<vmem>>, vector<512x512xbf16>
    %cst_8 = arith.constant dense<0.000000e+00> : vector<128x512xf32>
    %10 = tpu.matmul %8, %9, %cst_8 {dimension_numbers = #tpu.dot_dimension_numbers<[1], [0], [0], [1], [0, 0, 1, 1], [], []>} : vector<128x512xbf16>, vector<512x512xbf16>, vector<128x512xf32> -> vector<128x512xf32>
    %c0_9 = arith.constant 0 : index
    %c0_10 = arith.constant 0 : index
    %11 = vector.load %arg5[%c0_9, %c0_10] : memref<1x512xf32, #tpu.memory_space<vmem>>, vector<1x512xf32>
    %12 = vector.broadcast %11 : vector<1x512xf32> to vector<128x512xf32>
    %13 = arith.addf %10, %12 : vector<128x512xf32>
    %cst_11 = arith.constant 0.000000e+00 : f32
    %14 = vector.broadcast %cst_11 : f32 to vector<128x512xf32>
    %15 = arith.maximumf %13, %14 : vector<128x512xf32>
    %16 = arith.truncf %15 : vector<128x512xf32> to vector<128x512xbf16>
    %c0_12 = arith.constant 0 : index
    %c0_13 = arith.constant 0 : index
    %17 = vector.load %arg6[%c0_12, %c0_13] : memref<512x256xbf16, #tpu.memory_space<vmem>>, vector<512x256xbf16>
    %cst_14 = arith.constant dense<0.000000e+00> : vector<128x256xf32>
    %18 = tpu.matmul %16, %17, %cst_14 {dimension_numbers = #tpu.dot_dimension_numbers<[1], [0], [0], [1], [0, 0, 1, 1], [], []>} : vector<128x512xbf16>, vector<512x256xbf16>, vector<128x256xf32> -> vector<128x256xf32>
    %c0_15 = arith.constant 0 : index
    %c0_16 = arith.constant 0 : index
    %19 = vector.load %arg7[%c0_15, %c0_16] : memref<1x256xf32, #tpu.memory_space<vmem>>, vector<1x256xf32>
    %20 = vector.broadcast %19 : vector<1x256xf32> to vector<128x256xf32>
    %21 = arith.addf %18, %20 : vector<128x256xf32>
    %22 = vector.extract_strided_slice %21 {offsets = [0, 0], sizes = [128, 128], strides = [1, 1]} : vector<128x256xf32> to vector<128x128xf32>
    %c0_17 = arith.constant 0 : index
    %c0_18 = arith.constant 0 : index
    %23 = vector.load %arg8[%c0_17, %c0_18] : memref<128x128xf32, #tpu.memory_space<vmem>>, vector<128x128xf32>
    tpu.vector_store %arg8[%c0_17, %c0_18], %22 {strides = array<i32>} : memref<128x128xf32, #tpu.memory_space<vmem>>, vector<128x128xf32>,
    %24 = vector.extract_strided_slice %21 {offsets = [0, 128], sizes = [128, 128], strides = [1, 1]} : vector<128x256xf32> to vector<128x128xf32>
    %25 = math.tanh %24 : vector<128x128xf32>
    %c0_19 = arith.constant 0 : index
    %c0_20 = arith.constant 0 : index
    %26 = vector.load %arg9[%c0_19, %c0_20] : memref<128x128xf32, #tpu.memory_space<vmem>>, vector<128x128xf32>
    tpu.vector_store %arg9[%c0_19, %c0_20], %25 {strides = array<i32>} : memref<128x128xf32, #tpu.memory_space<vmem>>, vector<128x128xf32>,
    return
  }
  func.func @transform_0(%arg0: i32) -> (i32, i32) {
    %c0_i32 = arith.constant 0 : i32
    %c0_i32_0 = arith.constant 0 : i32
    return %arg0, %c0_i32 : i32, i32
  }
  func.func @transform_1(%arg0: i32) -> (i32, i32) {
    %c0_i32 = arith.constant 0 : i32
    %c0_i32_0 = arith.constant 0 : i32
    %c0_i32_1 = arith.constant 0 : i32
    return %c0_i32, %c0_i32_0 : i32, i32
  }
  func.func @transform_2(%arg0: i32) -> (i32, i32) {
    %c0_i32 = arith.constant 0 : i32
    %c0_i32_0 = arith.constant 0 : i32
    %c0_i32_1 = arith.constant 0 : i32
    return %c0_i32, %c0_i32_0 : i32, i32
  }
  func.func @transform_3(%arg0: i32) -> (i32, i32) {
    %c0_i32 = arith.constant 0 : i32
    %c0_i32_0 = arith.constant 0 : i32
    %c0_i32_1 = arith.constant 0 : i32
    return %c0_i32, %c0_i32_0 : i32, i32
  }
  func.func @transform_4(%arg0: i32) -> (i32, i32) {
    %c0_i32 = arith.constant 0 : i32
    %c0_i32_0 = arith.constant 0 : i32
    %c0_i32_1 = arith.constant 0 : i32
    return %c0_i32, %c0_i32_0 : i32, i32
  }
  func.func @transform_5(%arg0: i32) -> (i32, i32) {
    %c0_i32 = arith.constant 0 : i32
    %c0_i32_0 = arith.constant 0 : i32
    %c0_i32_1 = arith.constant 0 : i32
    return %c0_i32, %c0_i32_0 : i32, i32
  }
  func.func @transform_6(%arg0: i32) -> (i32, i32) {
    %c0_i32 = arith.constant 0 : i32
    %c0_i32_0 = arith.constant 0 : i32
    %c0_i32_1 = arith.constant 0 : i32
    return %c0_i32, %c0_i32_0 : i32, i32
  }
  func.func @transform_7(%arg0: i32) -> (i32, i32) {
    %c0_i32 = arith.constant 0 : i32
    %c0_i32_0 = arith.constant 0 : i32
    return %arg0, %c0_i32 : i32, i32
  }
  func.func @transform_8(%arg0: i32) -> (i32, i32) {
    %c0_i32 = arith.constant 0 : i32
    %c0_i32_0 = arith.constant 0 : i32
    return %arg0, %c0_i32 : i32, i32
  }
}

</mosaic_0001>

<llo_original>
// kernel: state_action_encoder_forward.1
$region0: #{state_action_encoder_forward.1}
  #allocation0 [shape = 'u32[]', space=smem, size = 0x4, offset = 0x4, fixed_abs, tag = 'smem constant byte address 0x4 - core index']
  #allocation1 [shape = 'u32[144,128]{1,0:T(1,128)}', space=vmem, size = 0x12000, scoped, tag = 'internal scratch']
  %s0 = inlined_call_operand.vmem [shape: bf16[256,6], index: 0, kind: input, shape index: {}]
  %s1 = inlined_call_operand.vmem [shape: bf16[6,512], index: 1, kind: input, shape index: {}]
  %s2 = inlined_call_operand.vmem [shape: f32[1,512], index: 2, kind: input, shape index: {}]
  %s3 = inlined_call_operand.hbm [shape: bf16[512,512], index: 3, kind: input, shape index: {}]
  %s4 = inlined_call_operand.vmem [shape: f32[1,512], index: 4, kind: input, shape index: {}]
  %s5 = inlined_call_operand.hbm [shape: bf16[512,256], index: 5, kind: input, shape index: {}]
  %s6 = inlined_call_operand.vmem [shape: f32[1,256], index: 6, kind: input, shape index: {}]
  %s7 = inlined_call_operand.hbm [shape: f32[256,128], index: 7, kind: output, shape index: {0}]
  %s8 = inlined_call_operand.hbm [shape: f32[256,128], index: 8, kind: output, shape index: {1}]
  %9 = xla_tuple %s7, %s8
  %s10 = sld [smem:[#allocation0]]
  $region77: #{state_action_encoder_forward.1} parent=0
    _
  %s12 = ssub.s32 1, %s10
  %s13 = scalar_select 0, %s12, %s10
  $region1: #{state_action_encoder_forward.1} parent=0
    #allocation2 [shape = 'u8[524288]{0}', space=vmem, size = 0x80000, scoped, tag = 'input window, operand 3, single buffered']
    #allocation3 [shape = 's32[2]{0}', space=sflag, size = 0x8, scoped, tag = 'scoped memory for state_action_encoder_forward.1']
    #allocation4 [shape = 's32[2]{0}', space=sflag, size = 0x8, scoped, tag = 'scoped memory for state_action_encoder_forward.1']
    #allocation5 [shape = 'u8[262144]{0}', space=vmem, size = 0x40000, scoped, tag = 'input window, operand 5, single buffered']
    #allocation6 [shape = 's32[1]{0}', space=sflag, size = 0x4, scoped, tag = 'scoped memory for state_action_encoder_forward.1']
    #allocation7 [shape = 'u8[131072]{0}', space=vmem, size = 0x20000, scoped, tag = 'output window, operand 0']
    #allocation8 [shape = 'u8[131072]{0}', space=vmem, size = 0x20000, scoped, tag = 'output window, operand 1']
    #allocation9 [shape = 's32[2]{0}', space=sflag, size = 0x8, scoped, tag = 'scoped memory for state_action_encoder_forward.1']
    %14 = vsyncpa [#allocation3], 0
    %15 = vsyncpa [#allocation6], 0
    %16 = vsyncpa [#allocation4], 0
    %s17 = scalar_lea.sflag [#allocation4], 1
    %18 = vsyncpa %s17, 0
    %19 = vsyncpa [#allocation9], 0
    %s20 = scalar_lea.sflag [#allocation9], 1
    %21 = vsyncpa %s20, 0
    loop: start=0, step=1, limit=4
    $region2: #{state_action_encoder_forward.1} parent=1 // loop_pre_header
      _
    $region3: #{state_action_encoder_forward.1} parent=1 // loop_header
      %s23 = sphi 0, %s27
      %p24 = scmp.ge.s32.totalorder %s23, 4
      %s33 = sphi 0, %s35
      %s36 = sphi 0, %s33
      %s37 = sphi 0, %s36
      %s53 = sphi 0, %s37
      %s57 = sphi 0, %s57
      %s59 = sphi 0, %s57
      %s60 = sphi 0, %s59
      %s74 = sphi 0, %s60
      %s78 = sphi 0, %s78
      %s80 = sphi 0, %s78
      %s81 = sphi 0, %s80
      %s95 = sphi 0, %s81
      %s99 = sphi 0, %s99
      %s101 = sphi 0, %s99
      %s102 = sphi 0, %s101
      %s116 = sphi 0, %s102
      %s120 = sphi 0, %s120
      %s122 = sphi 0, %s120
      %s123 = sphi 0, %s122
      %s137 = sphi 0, %s123
      %s141 = sphi 0, %s141
      %s143 = sphi 0, %s141
      %s144 = sphi 0, %s143
      %s158 = sphi 0, %s144
      %s162 = sphi 0, %s162
      %s164 = sphi 0, %s162
      %s165 = sphi 0, %s164
      %s179 = sphi 0, %s165
      %s185 = sphi 0, %s187
      %s188 = sphi 0, %s185
      %s189 = sphi 0, %s188
      %s205 = sphi 0, %s189
      %s211 = sphi 0, %s213
      %s214 = sphi 0, %s211
      %s215 = sphi 0, %s214
      %s231 = sphi 0, %s215
    $region4: #{state_action_encoder_forward.1} parent=1 // loop_header_branch
      %26 = sbr.rel (%p24) target = $region8
    $region5: #{state_action_encoder_forward.1} parent=1 // loop_body
      %s28 = ssub.s32 %s23, 1
      %s29 = ssub.s32 %s23, 2
      %s30 = sadd.s32 %s23, 1
      %s31 = ssub.s32 %s23, %s30
      %p32 = scmp.eq.s32.totalorder %s31, 0
      %s34 = sadd.s32 %s33, 1
      %s35 = scalar_select %p32, %s33, %s34
      %p38 = pneg %p32
      %p39 = scmp.eq.s32.totalorder %s23, 1
      %p40 = por %p38, %p39
      %p41 = scmp.ne.s32.totalorder %s33, %s36
      %p42 = scmp.eq.s32.totalorder %s23, 0
      %p43 = por %p41, %p42
      %p44 = scmp.ne.s32.totalorder %s33, %s36
      %p45 = scmp.eq.s32.totalorder %s28, 1
      %p46 = por %p44, %p45
      %p47 = scmp.ne.s32.totalorder %s36, %s37
      %p48 = scmp.eq.s32.totalorder %s28, 0
      %p49 = por %p47, %p48
      %p50 = scmp.ne.s32.totalorder %s36, %s37
      %p51 = scmp.eq.s32.totalorder %s29, 1
      %p52 = por %p50, %p51
      %p54 = scmp.ne.s32.totalorder %s37, %s53
      %p55 = scmp.eq.s32.totalorder %s29, 0
      %p56 = por %p54, %p55
      %s58 = sadd.s32 %s57, 1
      %p61 = scmp.eq.s32.totalorder %s23, 1
      %p62 = scmp.ne.s32.totalorder %s57, %s59
      %p63 = scmp.eq.s32.totalorder %s23, 0
      %p64 = por %p62, %p63
      %p65 = scmp.ne.s32.totalorder %s57, %s59
      %p66 = scmp.eq.s32.totalorder %s28, 1
      %p67 = por %p65, %p66
      %p68 = scmp.ne.s32.totalorder %s59, %s60
      %p69 = scmp.eq.s32.totalorder %s28, 0
      %p70 = por %p68, %p69
      %p71 = scmp.ne.s32.totalorder %s59, %s60
      %p72 = scmp.eq.s32.totalorder %s29, 1
      %p73 = por %p71, %p72
      %p75 = scmp.ne.s32.totalorder %s60, %s74
      %p76 = scmp.eq.s32.totalorder %s29, 0
      %p77 = por %p75, %p76
      %s79 = sadd.s32 %s78, 1
      %p82 = scmp.eq.s32.totalorder %s23, 1
      %p83 = scmp.ne.s32.totalorder %s78, %s80
      %p84 = scmp.eq.s32.totalorder %s23, 0
      %p85 = por %p83, %p84
      %p86 = scmp.ne.s32.totalorder %s78, %s80
      %p87 = scmp.eq.s32.totalorder %s28, 1
      %p88 = por %p86, %p87
      %p89 = scmp.ne.s32.totalorder %s80, %s81
      %p90 = scmp.eq.s32.totalorder %s28, 0
      %p91 = por %p89, %p90
      %p92 = scmp.ne.s32.totalorder %s80, %s81
      %p93 = scmp.eq.s32.totalorder %s29, 1
      %p94 = por %p92, %p93
      %p96 = scmp.ne.s32.totalorder %s81, %s95
      %p97 = scmp.eq.s32.totalorder %s29, 0
      %p98 = por %p96, %p97
      %s100 = sadd.s32 %s99, 1
      %p103 = scmp.eq.s32.totalorder %s23, 1
      %p104 = scmp.ne.s32.totalorder %s99, %s101
      %p105 = scmp.eq.s32.totalorder %s23, 0
      %p106 = por %p104, %p105
      %p107 = scmp.ne.s32.totalorder %s99, %s101
      %p108 = scmp.eq.s32.totalorder %s28, 1
      %p109 = por %p107, %p108
      %p110 = scmp.ne.s32.totalorder %s101, %s102
      %p111 = scmp.eq.s32.totalorder %s28, 0
      %p112 = por %p110, %p111
      %p113 = scmp.ne.s32.totalorder %s101, %s102
      %p114 = scmp.eq.s32.totalorder %s29, 1
      %p115 = por %p113, %p114
      %p117 = scmp.ne.s32.totalorder %s102, %s116
      %p118 = scmp.eq.s32.totalorder %s29, 0
      %p119 = por %p117, %p118
      %s121 = sadd.s32 %s120, 1
      %p124 = scmp.eq.s32.totalorder %s23, 1
      %p125 = scmp.ne.s32.totalorder %s120, %s122
      %p126 = scmp.eq.s32.totalorder %s23, 0
      %p127 = por %p125, %p126
      %p128 = scmp.ne.s32.totalorder %s120, %s122
      %p129 = scmp.eq.s32.totalorder %s28, 1
      %p130 = por %p128, %p129
      %p131 = scmp.ne.s32.totalorder %s122, %s123
      %p132 = scmp.eq.s32.totalorder %s28, 0
      %p133 = por %p131, %p132
      %p134 = scmp.ne.s32.totalorder %s122, %s123
      %p135 = scmp.eq.s32.totalorder %s29, 1
      %p136 = por %p134, %p135
      %p138 = scmp.ne.s32.totalorder %s123, %s137
      %p139 = scmp.eq.s32.totalorder %s29, 0
      %p140 = por %p138, %p139
      %s142 = sadd.s32 %s141, 1
      %p145 = scmp.eq.s32.totalorder %s23, 1
      %p146 = scmp.ne.s32.totalorder %s141, %s143
      %p147 = scmp.eq.s32.totalorder %s23, 0
      %p148 = por %p146, %p147
      %p149 = scmp.ne.s32.totalorder %s141, %s143
      %p150 = scmp.eq.s32.totalorder %s28, 1
      %p151 = por %p149, %p150
      %p152 = scmp.ne.s32.totalorder %s143, %s144
      %p153 = scmp.eq.s32.totalorder %s28, 0
      %p154 = por %p152, %p153
      %p155 = scmp.ne.s32.totalorder %s143, %s144
      %p156 = scmp.eq.s32.totalorder %s29, 1
      %p157 = por %p155, %p156
      %p159 = scmp.ne.s32.totalorder %s144, %s158
      %p160 = scmp.eq.s32.totalorder %s29, 0
      %p161 = por %p159, %p160
      %s163 = sadd.s32 %s162, 1
      %p166 = scmp.eq.s32.totalorder %s23, 1
      %p167 = scmp.ne.s32.totalorder %s162, %s164
      %p168 = scmp.eq.s32.totalorder %s23, 0
      %p169 = por %p167, %p168
      %p170 = scmp.ne.s32.totalorder %s162, %s164
      %p171 = scmp.eq.s32.totalorder %s28, 1
      %p172 = por %p170, %p171
      %p173 = scmp.ne.s32.totalorder %s164, %s165
      %p174 = scmp.eq.s32.totalorder %s28, 0
      %p175 = por %p173, %p174
      %p176 = scmp.ne.s32.totalorder %s164, %s165
      %p177 = scmp.eq.s32.totalorder %s29, 1
      %p178 = por %p176, %p177
      %p180 = scmp.ne.s32.totalorder %s165, %s179
      %p181 = scmp.eq.s32.totalorder %s29, 0
      %p182 = por %p180, %p181
      %s183 = ssub.s32 %s23, %s30
      %p184 = scmp.eq.s32.totalorder %s183, 0
      %s186 = sadd.s32 %s185, 1
      %s187 = scalar_select %p184, %s185, %s186
      %p190 = pneg %p184
      %p191 = scmp.eq.s32.totalorder %s23, 1
      %p192 = por %p190, %p191
      %p193 = scmp.ne.s32.totalorder %s185, %s188
      %p194 = scmp.eq.s32.totalorder %s23, 0
      %p195 = por %p193, %p194
      %p196 = scmp.ne.s32.totalorder %s185, %s188
      %p197 = scmp.eq.s32.totalorder %s28, 1
      %p198 = por %p196, %p197
      %p199 = scmp.ne.s32.totalorder %s188, %s189
      %p200 = scmp.eq.s32.totalorder %s28, 0
      %p201 = por %p199, %p200
      %p202 = scmp.ne.s32.totalorder %s188, %s189
      %p203 = scmp.eq.s32.totalorder %s29, 1
      %p204 = por %p202, %p203
      %p206 = scmp.ne.s32.totalorder %s189, %s205
      %p207 = scmp.eq.s32.totalorder %s29, 0
      %p208 = por %p206, %p207
      %s209 = ssub.s32 %s23, %s30
      %p210 = scmp.eq.s32.totalorder %s209, 0
      %s212 = sadd.s32 %s211, 1
      %s213 = scalar_select %p210, %s211, %s212
      %p216 = pneg %p210
      %p217 = scmp.eq.s32.totalorder %s23, 1
      %p218 = por %p216, %p217
      %p219 = scmp.ne.s32.totalorder %s211, %s214
      %p220 = scmp.eq.s32.totalorder %s23, 0
      %p221 = por %p219, %p220
      %p222 = scmp.ne.s32.totalorder %s211, %s214
      %p223 = scmp.eq.s32.totalorder %s28, 1
      %p224 = por %p222, %p223
      %p225 = scmp.ne.s32.totalorder %s214, %s215
      %p226 = scmp.eq.s32.totalorder %s28, 0
      %p227 = por %p225, %p226
      %p228 = scmp.ne.s32.totalorder %s214, %s215
      %p229 = scmp.eq.s32.totalorder %s29, 1
      %p230 = por %p228, %p229
      %p232 = scmp.ne.s32.totalorder %s215, %s231
      %p233 = scmp.eq.s32.totalorder %s29, 0
      %p234 = por %p232, %p233
      %p235 = scmp.le.s32.totalorder 1, %s23
      %p236 = scmp.lt.s32.totalorder %s23, 3
      %p237 = pnand %p235, %p236
      %p238 = pneg %p237
      // Predicated region
      $region9: #{state_action_encoder_forward.1} parent=5 // pred_check
        _
      $region10: #{state_action_encoder_forward.1} parent=5 // pred_check_branch
        %240 = sbr.rel (%p237) target = $region12
      $region11: #{state_action_encoder_forward.1} parent=5 // pred_region
        %s241 = ssub.s32 %s23, 1
        // Predicated region
        $region13: #{state_action_encoder_forward.1} parent=11 // pred_check
          %p242 = pneg %p70
        $region14: #{state_action_encoder_forward.1} parent=11 // pred_check_branch
          %244 = sbr.rel (%p242) target = $region16
        $region15: #{state_action_encoder_forward.1} parent=11 // pred_region
          _
        $region16: #{state_action_encoder_forward.1} parent=11 // pred_fallthru
          _
        // Predicated region
        $region17: #{state_action_encoder_forward.1} parent=11 // pred_check
          %p245 = pneg %p91
        $region18: #{state_action_encoder_forward.1} parent=11 // pred_check_branch
          %247 = sbr.rel (%p245) target = $region20
        $region19: #{state_action_encoder_forward.1} parent=11 // pred_region
          _
        $region20: #{state_action_encoder_forward.1} parent=11 // pred_fallthru
          _
        // Predicated region
        $region21: #{state_action_encoder_forward.1} parent=11 // pred_check
          %p248 = pneg %p112
        $region22: #{state_action_encoder_forward.1} parent=11 // pred_check_branch
          %250 = sbr.rel (%p248) target = $region24
        $region23: #{state_action_encoder_forward.1} parent=11 // pred_region
          %s252 = ssub.s32 16384, 16384
          %253 = vsyncadd [#allocation3], %s252
          %s254 = sshll.u32 [#allocation2], 4
          %s255 = int_to_ptr.vmem [resolvable:$true] %s254
          %260 = dma.hbm_to_vmem [thread:$0]  %s3, 16384, %s255, [#allocation3], 256, 256, 16
        $region24: #{state_action_encoder_forward.1} parent=11 // pred_fallthru
          _
        // Predicated region
        $region25: #{state_action_encoder_forward.1} parent=11 // pred_check
          %p261 = pneg %p133
        $region26: #{state_action_encoder_forward.1} parent=11 // pred_check_branch
          %263 = sbr.rel (%p261) target = $region28
        $region27: #{state_action_encoder_forward.1} parent=11 // pred_region
          _
        $region28: #{state_action_encoder_forward.1} parent=11 // pred_fallthru
          _
        // Predicated region
        $region29: #{state_action_encoder_forward.1} parent=11 // pred_check
          %p264 = pneg %p154
        $region30: #{state_action_encoder_forward.1} parent=11 // pred_check_branch
          %266 = sbr.rel (%p264) target = $region32
        $region31: #{state_action_encoder_forward.1} parent=11 // pred_region
          %s268 = ssub.s32 8192, 8192
          %269 = vsyncadd [#allocation6], %s268
          %s270 = sshll.u32 [#allocation5], 4
          %s271 = int_to_ptr.vmem [resolvable:$true] %s270
          %276 = dma.hbm_to_vmem [thread:$0]  %s5, 8192, %s271, [#allocation6], 128, 128, 8
        $region32: #{state_action_encoder_forward.1} parent=11 // pred_fallthru
          _
        // Predicated region
        $region33: #{state_action_encoder_forward.1} parent=11 // pred_check
          %p277 = pneg %p175
        $region34: #{state_action_encoder_forward.1} parent=11 // pred_check_branch
          %279 = sbr.rel (%p277) target = $region36
        $region35: #{state_action_encoder_forward.1} parent=11 // pred_region
          _
        $region36: #{state_action_encoder_forward.1} parent=11 // pred_fallthru
          _
      $region12: #{state_action_encoder_forward.1} parent=5 // pred_fallthru
        _
      %p280 = scmp.lt.s32.totalorder %s23, 2
      // Predicated region
      $region37: #{state_action_encoder_forward.1} parent=5 // pred_check
        %p281 = pneg %p280
      $region38: #{state_action_encoder_forward.1} parent=5 // pred_check_branch
        %283 = sbr.rel (%p281) target = $region40
      $region39: #{state_action_encoder_forward.1} parent=5 // pred_region
        // Predicated region
        $region41: #{state_action_encoder_forward.1} parent=39 // pred_check
          %p284 = pneg %p43
        $region42: #{state_action_encoder_forward.1} parent=39 // pred_check_branch
          %286 = sbr.rel (%p284) target = $region44
        $region43: #{state_action_encoder_forward.1} parent=39 // pred_region
          %s287 = smul.u32 16, %s23
          %p288 = scmp.lt.s32.totalorder %s287, 31
          %s289 = scalar_select %p288, %s287, 31
          %s290 = smul.addr %s289, 4
          %s291 = scalar_lea.vmem %s0, %s290
          %s292 = smul.u32 16, %s23
        $region44: #{state_action_encoder_forward.1} parent=39 // pred_fallthru
          _
      $region40: #{state_action_encoder_forward.1} parent=5 // pred_fallthru
        _
      %p293 = scmp.le.s32.totalorder 1, %s23
      %p294 = scmp.lt.s32.totalorder %s23, 3
      %p295 = pnand %p293, %p294
      %p296 = pneg %p295
      // Predicated region
      $region45: #{state_action_encoder_forward.1} parent=5 // pred_check
        _
      $region46: #{state_action_encoder_forward.1} parent=5 // pred_check_branch
        %298 = sbr.rel (%p295) target = $region48
      $region47: #{state_action_encoder_forward.1} parent=5 // pred_region
        %s299 = ssub.s32 %s23, 1
        // Predicated region
        $region49: #{state_action_encoder_forward.1} parent=47 // pred_check
          %p300 = pneg %p112
        $region50: #{state_action_encoder_forward.1} parent=47 // pred_check_branch
          %302 = sbr.rel (%p300) target = $region52
        $region51: #{state_action_encoder_forward.1} parent=47 // pred_region
          %303 = dma.done [#allocation3], 16384
        $region52: #{state_action_encoder_forward.1} parent=47 // pred_fallthru
          _
        // Predicated region
        $region53: #{state_action_encoder_forward.1} parent=47 // pred_check
          %p304 = pneg %p154
        $region54: #{state_action_encoder_forward.1} parent=47 // pred_check_branch
          %306 = sbr.rel (%p304) target = $region56
        $region55: #{state_action_encoder_forward.1} parent=47 // pred_region
          %307 = dma.done [#allocation6], 8192
        $region56: #{state_action_encoder_forward.1} parent=47 // pred_fallthru
          _
        %s308 = smul.u32 16, %s28
        %p309 = scmp.lt.s32.totalorder %s308, 31
        %s310 = scalar_select %p309, %s308, 31
        %s311 = smul.addr %s310, 4
        %s312 = scalar_lea.vmem %s0, %s311
        %p313 = pneg %p49
        %p314 = pneg %p46
        %p315 = pneg %p70
        %p316 = pneg %p67
        %p317 = pneg %p91
        %p318 = pneg %p88
        %p319 = pneg %p112
        %p320 = pneg %p109
        %p321 = pneg %p133
        %p322 = pneg %p130
        %p323 = pneg %p154
        %p324 = pneg %p151
        %p325 = pneg %p175
        %p326 = pneg %p172
        %p327 = pneg %p201
        %p328 = pneg %p198
        %s329 = sand.u32 %s188, 1
        %s330 = scalar_lea.sflag [#allocation4], %s329
        %s331 = sand.u32 %s188, 1
        %s332 = smul.addr %s331, 128
        %s333 = scalar_lea.vmem [#allocation7], %s332
        %p334 = pneg %p227
        %p335 = pneg %p224
        %s336 = sand.u32 %s214, 1
        %s337 = scalar_lea.sflag [#allocation9], %s336
        %s338 = sand.u32 %s214, 1
        %s339 = smul.addr %s338, 128
        %s340 = scalar_lea.vmem [#allocation8], %s339
        %s341 = smul.u32 16, %s28
        %p342 = scmp.lt.s32.totalorder %s341, 31
        %s343 = scalar_select %p342, %s341, 31
        %s344 = smul.addr %s343, 4
        %s345 = scalar_lea.vmem %s0, %s344
        %s346 = smul.u32 16, %s28
        %s347 = smul.u32 16, %s28
        %s348 = smul.u32 16, %s28
        %v350 = vld [vmem:[%s345] sm:$0xf]
        %v351 = vld [vmem:[%s345 + $0x4] sm:$0xf]
        %v352 = vld [vmem:[%s345 + $0x8] sm:$0xf]
        %v353 = vld [vmem:[%s345 + $0xc] sm:$0xf]
        %v354 = vld [vmem:[%s345 + $0x10] sm:$0xf]
        %v355 = vld [vmem:[%s345 + $0x14] sm:$0xf]
        %v356 = vld [vmem:[%s345 + $0x18] sm:$0xf]
        %v357 = vld [vmem:[%s345 + $0x1c] sm:$0xf]
        %v358 = vld [vmem:[%s345 + $0x20] sm:$0xf]
        %v359 = vld [vmem:[%s345 + $0x24] sm:$0xf]
        %v360 = vld [vmem:[%s345 + $0x28] sm:$0xf]
        %v361 = vld [vmem:[%s345 + $0x2c] sm:$0xf]
        %v362 = vld [vmem:[%s345 + $0x30] sm:$0xf]
        %v363 = vld [vmem:[%s345 + $0x34] sm:$0xf]
        %v364 = vld [vmem:[%s345 + $0x38] sm:$0xf]
        %v365 = vld [vmem:[%s345 + $0x3c] sm:$0xf]
        %v366 = vld [vmem:[%s1] sm:$0x77]
        %v367 = vld [vmem:[%s1 + $0x8] sm:$0x77]
        %v368 = vld [vmem:[%s2] sm:$0xf]
        %v370 = vlaneseq
        %v371 = vshrl.u32 %v370, 7
        %v372 = vsub.s32 0, %v371
        %v373 = vrot.slane %v368, %v372
        %v374 = vlaneseq
        %v375 = vshrl.u32 %v374, 7
        %v376 = vsub.s32 1, %v375
        %v377 = vrot.slane %v368, %v376
        %v378 = vlaneseq
        %v379 = vshrl.u32 %v378, 7
        %v380 = vsub.s32 2, %v379
        %v381 = vrot.slane %v368, %v380
        %v382 = vlaneseq
        %v383 = vshrl.u32 %v382, 7
        %v384 = vsub.s32 3, %v383
        %v385 = vrot.slane %v368, %v384
        %v406 = vunpack.c.l.b16 %v350
        %v407 = vunpack.c.l.b16 %v351
        %v408 = vunpack.c.l.b16 %v352
        %v409 = vunpack.c.l.b16 %v353
        %v410 = vunpack.c.l.b16 %v354
        %v411 = vunpack.c.l.b16 %v355
        %v412 = vunpack.c.l.b16 %v356
        %v413 = vunpack.c.l.b16 %v357
        %v414 = vunpack.c.l.b16 %v358
        %v415 = vunpack.c.l.b16 %v359
        %v416 = vunpack.c.l.b16 %v360
        %v417 = vunpack.c.l.b16 %v361
        %v418 = vunpack.c.l.b16 %v362
        %v419 = vunpack.c.l.b16 %v363
        %v420 = vunpack.c.l.b16 %v364
        %v421 = vunpack.c.l.b16 %v365
        %v422 = vpack.c.b16 %v407, %v406
        %v423 = vpack.c.b16 %v409, %v408
        %v424 = vpack.c.b16 %v411, %v410
        %v425 = vpack.c.b16 %v413, %v412
        %v426 = vpack.c.b16 %v415, %v414
        %v427 = vpack.c.b16 %v417, %v416
        %v428 = vpack.c.b16 %v419, %v418
        %v429 = vpack.c.b16 %v421, %v420
        %v432 = vunpack.c.l.b16 %v366
        %v433 = vunpack.c.h.b16 %v366
        %v434 = vunpack.c.l.b16 %v367
        %v435 = vunpack.c.h.b16 %v367
        %v436 = vpack.c.b16 %v432, %v432
        %v437 = vpack.c.b16 %v433, %v433
        %v438 = vpack.c.b16 %v434, %v434
        %v439 = vpack.c.b16 %v435, %v435
        %vm440 = vcmask 48128
        %v442 = vsel %vm440, %v422, 0
        %v445 = vsel %vm440, %v423, 0
        %v448 = vsel %vm440, %v424, 0
        %v451 = vsel %vm440, %v425, 0
        %v454 = vsel %vm440, %v426, 0
        %v457 = vsel %vm440, %v427, 0
        %v460 = vsel %vm440, %v428, 0
        %v463 = vsel %vm440, %v429, 0
        %vm465 = vcmask 1042432
        %v467 = vsel %vm465, %v436, 0
        %v470 = vsel %vm465, %v437, 0
        %v473 = vsel %vm465, %v438, 0
        %v476 = vsel %vm465, %v439, 0
        %478 = vmatprep.subr.bf16.mxu0 %v470
        %479 = vmatpush1.bf16.msra.mxu0 %v467
        %480 = vmatprep.subr.bf16.mxu0 0
        %481 = vmatpush1.bf16.msra.mxu0 0
        %482 = vmatprep.subr.bf16.mxu0 0
        %483 = vmatpush1.bf16.msra.mxu0 0
        %484 = vmatprep.subr.bf16.mxu0 0
        %485 = vmatpush1.bf16.msra.mxu0 0
        %486 = vmatprep.subr.bf16.mxu0 0
        %487 = vmatpush1.bf16.msra.mxu0 0
        %488 = vmatprep.subr.bf16.mxu0 0
        %489 = vmatpush1.bf16.msra.mxu0 0
        %490 = vmatprep.subr.bf16.mxu0 0
        %491 = vmatpush1.bf16.msra.mxu0 0
        %492 = vmatprep.subr.bf16.mxu0 0
        %493 = vmatpush1.bf16.msra.mxu0 0
        %494 = vmatprep.subr.bf16.mxu0 0
        %495 = vmatpush1.bf16.msra.mxu0 0
        %496 = vmatprep.subr.bf16.mxu0 0
        %497 = vmatpush1.bf16.msra.mxu0 0
        %498 = vmatprep.subr.bf16.mxu0 0
        %499 = vmatpush1.bf16.msra.mxu0 0
        %500 = vmatprep.subr.bf16.mxu0 0
        %501 = vmatpush1.bf16.msra.mxu0 0
        %502 = vmatprep.subr.bf16.mxu0 0
        %503 = vmatpush1.bf16.msra.mxu0 0
        %504 = vmatprep.subr.bf16.mxu0 0
        %505 = vmatpush1.bf16.msra.mxu0 0
        %506 = vmatprep.subr.bf16.mxu0 0
        %507 = vmatpush1.bf16.msra.mxu0 0
        %508 = vmatprep.subr.bf16.mxu0 0
        %509 = vmatpush1.bf16.msra.mxu0 0
        %510 = vmatprep.mubr.bf16.mxu0 0
        %511 = vmatmul.mubr.bf16.gmra.mrb[0].mxu0 %v442
        %v512 = vpop.f32.mrb[0].mxu0
        %v513 = vadd.f32 %v373, %v512
        %v514 = vpop.f32.mrb[0].mxu0
        %v515 = vadd.f32 %v377, %v514
        %v516 = vpop.f32.mrb[0].mxu0
        %v517 = vadd.f32 %v373, %v516
        %v518 = vpop.f32.mrb[0].mxu0
        %v519 = vadd.f32 %v377, %v518
        %520 = vmatprep.mubr.bf16.mxu0 0
        %521 = vmatmul.mubr.bf16.gmra.mrb[0].mxu0 %v445
        %v522 = vpop.f32.mrb[0].mxu0
        %v523 = vadd.f32 %v373, %v522
        %v524 = vpop.f32.mrb[0].mxu0
        %v525 = vadd.f32 %v377, %v524
        %v526 = vpop.f32.mrb[0].mxu0
        %v527 = vadd.f32 %v373, %v526
        %v528 = vpop.f32.mrb[0].mxu0
        %v529 = vadd.f32 %v377, %v528
        %530 = vmatprep.mubr.bf16.mxu0 0
        %531 = vmatmul.mubr.bf16.gmra.mrb[0].mxu0 %v448
        %v532 = vpop.f32.mrb[0].mxu0
        %v533 = vadd.f32 %v373, %v532
        %v534 = vpop.f32.mrb[0].mxu0
        %v535 = vadd.f32 %v377, %v534
        %v536 = vpop.f32.mrb[0].mxu0
        %v537 = vadd.f32 %v373, %v536
        %v538 = vpop.f32.mrb[0].mxu0
        %v539 = vadd.f32 %v377, %v538
        %540 = vmatprep.mubr.bf16.mxu0 0
        %541 = vmatmul.mubr.bf16.gmra.mrb[0].mxu0 %v451
        %v542 = vpop.f32.mrb[0].mxu0
        %v543 = vadd.f32 %v373, %v542
        %v544 = vpop.f32.mrb[0].mxu0
        %v545 = vadd.f32 %v377, %v544
        %v546 = vpop.f32.mrb[0].mxu0
        %v547 = vadd.f32 %v373, %v546
        %v548 = vpop.f32.mrb[0].mxu0
        %v549 = vadd.f32 %v377, %v548
        %550 = vmatprep.mubr.bf16.mxu0 0
        %551 = vmatmul.mubr.bf16.gmra.mrb[0].mxu0 %v454
        %v552 = vpop.f32.mrb[0].mxu0
        %v553 = vadd.f32 %v373, %v552
        %v554 = vpop.f32.mrb[0].mxu0
        %v555 = vadd.f32 %v377, %v554
        %v556 = vpop.f32.mrb[0].mxu0
        %v557 = vadd.f32 %v373, %v556
        %v558 = vpop.f32.mrb[0].mxu0
        %v559 = vadd.f32 %v377, %v558
        %560 = vmatprep.mubr.bf16.mxu0 0
        %561 = vmatmul.mubr.bf16.gmra.mrb[0].mxu0 %v457
        %v562 = vpop.f32.mrb[0].mxu0
        %v563 = vadd.f32 %v373, %v562
        %v564 = vpop.f32.mrb[0].mxu0
        %v565 = vadd.f32 %v377, %v564
        %v566 = vpop.f32.mrb[0].mxu0
        %v567 = vadd.f32 %v373, %v566
        %v568 = vpop.f32.mrb[0].mxu0
        %v569 = vadd.f32 %v377, %v568
        %570 = vmatprep.mubr.bf16.mxu0 0
        %571 = vmatmul.mubr.bf16.gmra.mrb[0].mxu0 %v460
        %v572 = vpop.f32.mrb[0].mxu0
        %v573 = vadd.f32 %v373, %v572
        %v574 = vpop.f32.mrb[0].mxu0
        %v575 = vadd.f32 %v377, %v574
        %v576 = vpop.f32.mrb[0].mxu0
        %v577 = vadd.f32 %v373, %v576
        %v578 = vpop.f32.mrb[0].mxu0
        %v579 = vadd.f32 %v377, %v578
        %580 = vmatprep.mubr.bf16.mxu0 0
        %581 = vmatmul.mubr.bf16.gmra.mrb[0].mxu0 %v463
        %v582 = vpop.f32.mrb[0].mxu0
        %v583 = vadd.f32 %v373, %v582
        %v584 = vpop.f32.mrb[0].mxu0
        %v585 = vadd.f32 %v377, %v584
        %v586 = vpop.f32.mrb[0].mxu0
        %v587 = vadd.f32 %v373, %v586
        %v588 = vpop.f32.mrb[0].mxu0
        %v589 = vadd.f32 %v377, %v588
        %590 = vdwg.mxu0
        %591 = vmatprep.subr.bf16.mxu0 %v476
        %592 = vmatpush1.bf16.msra.mxu0 %v473
        %593 = vmatprep.subr.bf16.mxu0 0
        %594 = vmatpush1.bf16.msra.mxu0 0
        %595 = vmatprep.subr.bf16.mxu0 0
        %596 = vmatpush1.bf16.msra.mxu0 0
        %597 = vmatprep.subr.bf16.mxu0 0
        %598 = vmatpush1.bf16.msra.mxu0 0
        %599 = vmatprep.subr.bf16.mxu0 0
        %600 = vmatpush1.bf16.msra.mxu0 0
        %601 = vmatprep.subr.bf16.mxu0 0
        %602 = vmatpush1.bf16.msra.mxu0 0
        %603 = vmatprep.subr.bf16.mxu0 0
        %604 = vmatpush1.bf16.msra.mxu0 0
        %605 = vmatprep.subr.bf16.mxu0 0
        %606 = vmatpush1.bf16.msra.mxu0 0
        %607 = vmatprep.subr.bf16.mxu0 0
        %608 = vmatpush1.bf16.msra.mxu0 0
        %609 = vmatprep.subr.bf16.mxu0 0
        %610 = vmatpush1.bf16.msra.mxu0 0
        %611 = vmatprep.subr.bf16.mxu0 0
        %612 = vmatpush1.bf16.msra.mxu0 0
        %613 = vmatprep.subr.bf16.mxu0 0
        %614 = vmatpush1.bf16.msra.mxu0 0
        %615 = vmatprep.subr.bf16.mxu0 0
        %616 = vmatpush1.bf16.msra.mxu0 0
        %617 = vmatprep.subr.bf16.mxu0 0
        %618 = vmatpush1.bf16.msra.mxu0 0
        %619 = vmatprep.subr.bf16.mxu0 0
        %620 = vmatpush1.bf16.msra.mxu0 0
        %621 = vmatprep.subr.bf16.mxu0 0
        %622 = vmatpush1.bf16.msra.mxu0 0
        %623 = vmatprep.mubr.bf16.mxu0 0
        %624 = vmatmul.mubr.bf16.gmra.mrb[0].mxu0 %v442
        %v625 = vpop.f32.mrb[0].mxu0
        %v626 = vadd.f32 %v381, %v625
        %v627 = vpop.f32.mrb[0].mxu0
        %v628 = vadd.f32 %v385, %v627
        %v629 = vpop.f32.mrb[0].mxu0
        %v630 = vadd.f32 %v381, %v629
        %v631 = vpop.f32.mrb[0].mxu0
        %v632 = vadd.f32 %v385, %v631
        %633 = vmatprep.mubr.bf16.mxu0 0
        %634 = vmatmul.mubr.bf16.gmra.mrb[0].mxu0 %v445
        %v635 = vpop.f32.mrb[0].mxu0
        %v636 = vadd.f32 %v381, %v635
        %v637 = vpop.f32.mrb[0].mxu0
        %v638 = vadd.f32 %v385, %v637
        %v639 = vpop.f32.mrb[0].mxu0
        %v640 = vadd.f32 %v381, %v639
        %v641 = vpop.f32.mrb[0].mxu0
        %v642 = vadd.f32 %v385, %v641
        %643 = vmatprep.mubr.bf16.mxu0 0
        %644 = vmatmul.mubr.bf16.gmra.mrb[0].mxu0 %v448
        %v645 = vpop.f32.mrb[0].mxu0
        %v646 = vadd.f32 %v381, %v645
        %v647 = vpop.f32.mrb[0].mxu0
        %v648 = vadd.f32 %v385, %v647
        %v649 = vpop.f32.mrb[0].mxu0
        %v650 = vadd.f32 %v381, %v649
        %v651 = vpop.f32.mrb[0].mxu0
        %v652 = vadd.f32 %v385, %v651
        %653 = vmatprep.mubr.bf16.mxu0 0
        %654 = vmatmul.mubr.bf16.gmra.mrb[0].mxu0 %v451
        %v655 = vpop.f32.mrb[0].mxu0
        %v656 = vadd.f32 %v381, %v655
        %v657 = vpop.f32.mrb[0].mxu0
        %v658 = vadd.f32 %v385, %v657
        %v659 = vpop.f32.mrb[0].mxu0
        %v660 = vadd.f32 %v381, %v659
        %v661 = vpop.f32.mrb[0].mxu0
        %v662 = vadd.f32 %v385, %v661
        %663 = vmatprep.mubr.bf16.mxu0 0
        %664 = vmatmul.mubr.bf16.gmra.mrb[0].mxu0 %v454
        %v665 = vpop.f32.mrb[0].mxu0
        %v666 = vadd.f32 %v381, %v665
        %v667 = vpop.f32.mrb[0].mxu0
        %v668 = vadd.f32 %v385, %v667
        %v669 = vpop.f32.mrb[0].mxu0
        %v670 = vadd.f32 %v381, %v669
        %v671 = vpop.f32.mrb[0].mxu0
        %v672 = vadd.f32 %v385, %v671
        %673 = vmatprep.mubr.bf16.mxu0 0
        %674 = vmatmul.mubr.bf16.gmra.mrb[0].mxu0 %v457
        %v675 = vpop.f32.mrb[0].mxu0
        %v676 = vadd.f32 %v381, %v675
        %v677 = vpop.f32.mrb[0].mxu0
        %v678 = vadd.f32 %v385, %v677
        %v679 = vpop.f32.mrb[0].mxu0
        %v680 = vadd.f32 %v381, %v679
        %v681 = vpop.f32.mrb[0].mxu0
        %v682 = vadd.f32 %v385, %v681
        %683 = vmatprep.mubr.bf16.mxu0 0
        %684 = vmatmul.mubr.bf16.gmra.mrb[0].mxu0 %v460
        %v685 = vpop.f32.mrb[0].mxu0
        %v686 = vadd.f32 %v381, %v685
        %v687 = vpop.f32.mrb[0].mxu0
        %v688 = vadd.f32 %v385, %v687
        %v689 = vpop.f32.mrb[0].mxu0
        %v690 = vadd.f32 %v381, %v689
        %v691 = vpop.f32.mrb[0].mxu0
        %v692 = vadd.f32 %v385, %v691
        %693 = vmatprep.mubr.bf16.mxu0 0
        %694 = vmatmul.mubr.bf16.gmra.mrb[0].mxu0 %v463
        %v695 = vpop.f32.mrb[0].mxu0
        %v696 = vadd.f32 %v381, %v695
        %v697 = vpop.f32.mrb[0].mxu0
        %v698 = vadd.f32 %v385, %v697
        %v699 = vpop.f32.mrb[0].mxu0
        %v700 = vadd.f32 %v381, %v699
        %v701 = vpop.f32.mrb[0].mxu0
        %v702 = vadd.f32 %v385, %v701
        %703 = vdwg.mxu0
        %v704 = vmax.f32 %v513, 0.0
        %v705 = vmax.f32 %v515, 0.0
        %v706 = vmax.f32 %v626, 0.0
        %v707 = vmax.f32 %v628, 0.0
        %v708 = vmax.f32 %v517, 0.0
        %v709 = vmax.f32 %v519, 0.0
        %v710 = vmax.f32 %v630, 0.0
        %v711 = vmax.f32 %v632, 0.0
        %v712 = vmax.f32 %v523, 0.0
        %v713 = vmax.f32 %v525, 0.0
        %v714 = vmax.f32 %v636, 0.0
        %v715 = vmax.f32 %v638, 0.0
        %v716 = vmax.f32 %v527, 0.0
        %v717 = vmax.f32 %v529, 0.0
        %v718 = vmax.f32 %v640, 0.0
        %v719 = vmax.f32 %v642, 0.0
        %v720 = vmax.f32 %v533, 0.0
        %v721 = vmax.f32 %v535, 0.0
        %v722 = vmax.f32 %v646, 0.0
        %v723 = vmax.f32 %v648, 0.0
        %v724 = vmax.f32 %v537, 0.0
        %v725 = vmax.f32 %v539, 0.0
        %v726 = vmax.f32 %v650, 0.0
        %v727 = vmax.f32 %v652, 0.0
        %v728 = vmax.f32 %v543, 0.0
        %v729 = vmax.f32 %v545, 0.0
        %v730 = vmax.f32 %v656, 0.0
        %v731 = vmax.f32 %v658, 0.0
        %v732 = vmax.f32 %v547, 0.0
        %v733 = vmax.f32 %v549, 0.0
        %v734 = vmax.f32 %v660, 0.0
        %v735 = vmax.f32 %v662, 0.0
        %v736 = vmax.f32 %v553, 0.0
        %v737 = vmax.f32 %v555, 0.0
        %v738 = vmax.f32 %v666, 0.0
        %v739 = vmax.f32 %v668, 0.0
        %v740 = vmax.f32 %v557, 0.0
        %v741 = vmax.f32 %v559, 0.0
        %v742 = vmax.f32 %v670, 0.0
        %v743 = vmax.f32 %v672, 0.0
        %v744 = vmax.f32 %v563, 0.0
        %v745 = vmax.f32 %v565, 0.0
        %v746 = vmax.f32 %v676, 0.0
        %v747 = vmax.f32 %v678, 0.0
        %v748 = vmax.f32 %v567, 0.0
        %v749 = vmax.f32 %v569, 0.0
        %v750 = vmax.f32 %v680, 0.0
        %v751 = vmax.f32 %v682, 0.0
        %v752 = vmax.f32 %v573, 0.0
        %v753 = vmax.f32 %v575, 0.0
        %v754 = vmax.f32 %v686, 0.0
        %v755 = vmax.f32 %v688, 0.0
        %v756 = vmax.f32 %v577, 0.0
        %v757 = vmax.f32 %v579, 0.0
        %v758 = vmax.f32 %v690, 0.0
        %v759 = vmax.f32 %v692, 0.0
        %v760 = vmax.f32 %v583, 0.0
        %v761 = vmax.f32 %v585, 0.0
        %v762 = vmax.f32 %v696, 0.0
        %v763 = vmax.f32 %v698, 0.0
        %v764 = vmax.f32 %v587, 0.0
        %v765 = vmax.f32 %v589, 0.0
        %v766 = vmax.f32 %v700, 0.0
        %v767 = vmax.f32 %v702, 0.0
        %v768 = vpack.c.bf16 %v708, %v704
        %v769 = vpack.c.bf16 %v709, %v705
        %v770 = vpack.c.bf16 %v710, %v706
        %v771 = vpack.c.bf16 %v711, %v707
        %v772 = vpack.c.bf16 %v716, %v712
        %v773 = vpack.c.bf16 %v717, %v713
        %v774 = vpack.c.bf16 %v718, %v714
        %v775 = vpack.c.bf16 %v719, %v715
        %v776 = vpack.c.bf16 %v724, %v720
        %v777 = vpack.c.bf16 %v725, %v721
        %v778 = vpack.c.bf16 %v726, %v722
        %v779 = vpack.c.bf16 %v727, %v723
        %v780 = vpack.c.bf16 %v732, %v728
        %v781 = vpack.c.bf16 %v733, %v729
        %v782 = vpack.c.bf16 %v734, %v730
        %v783 = vpack.c.bf16 %v735, %v731
        %v784 = vpack.c.bf16 %v740, %v736
        %v785 = vpack.c.bf16 %v741, %v737
        %v786 = vpack.c.bf16 %v742, %v738
        %v787 = vpack.c.bf16 %v743, %v739
        %v788 = vpack.c.bf16 %v748, %v744
        %v789 = vpack.c.bf16 %v749, %v745
        %v790 = vpack.c.bf16 %v750, %v746
        %v791 = vpack.c.bf16 %v751, %v747
        %v792 = vpack.c.bf16 %v756, %v752
        %v793 = vpack.c.bf16 %v757, %v753
        %v794 = vpack.c.bf16 %v758, %v754
        %v795 = vpack.c.bf16 %v759, %v755
        %v796 = vpack.c.bf16 %v764, %v760
        %v797 = vpack.c.bf16 %v765, %v761
        %v798 = vpack.c.bf16 %v766, %v762
        %v799 = vpack.c.bf16 %v767, %v763
        %v800 = vld [vmem:[#allocation2] sm:$0xff]
        %v801 = vld [vmem:[#allocation2 + $0x8] sm:$0xff]
        %v802 = vld [vmem:[#allocation2 + $0x10] sm:$0xff]
        %v803 = vld [vmem:[#allocation2 + $0x18] sm:$0xff]
        %v804 = vld [vmem:[#allocation2 + $0x20] sm:$0xff]
        %v805 = vld [vmem:[#allocation2 + $0x28] sm:$0xff]
        %v806 = vld [vmem:[#allocation2 + $0x30] sm:$0xff]
        %v807 = vld [vmem:[#allocation2 + $0x38] sm:$0xff]
        %v808 = vld [vmem:[#allocation2 + $0x40] sm:$0xff]
        %v809 = vld [vmem:[#allocation2 + $0x48] sm:$0xff]
        %v810 = vld [vmem:[#allocation2 + $0x50] sm:$0xff]
        %v811 = vld [vmem:[#allocation2 + $0x58] sm:$0xff]
        %v812 = vld [vmem:[#allocation2 + $0x60] sm:$0xff]
        %v813 = vld [vmem:[#allocation2 + $0x68] sm:$0xff]
        %v814 = vld [vmem:[#allocation2 + $0x70] sm:$0xff]
        %v815 = vld [vmem:[#allocation2 + $0x78] sm:$0xff]
        %v816 = vld [vmem:[#allocation2 + $0x80] sm:$0xff]
        %v817 = vld [vmem:[#allocation2 + $0x88] sm:$0xff]
        %v818 = vld [vmem:[#allocation2 + $0x90] sm:$0xff]
        %v819 = vld [vmem:[#allocation2 + $0x98] sm:$0xff]
        %v820 = vld [vmem:[#allocation2 + $0xa0] sm:$0xff]
        %v821 = vld [vmem:[#allocation2 + $0xa8] sm:$0xff]
        %v822 = vld [vmem:[#allocation2 + $0xb0] sm:$0xff]
        %v823 = vld [vmem:[#allocation2 + $0xb8] sm:$0xff]
        %v824 = vld [vmem:[#allocation2 + $0xc0] sm:$0xff]
        %v825 = vld [vmem:[#allocation2 + $0xc8] sm:$0xff]
        %v826 = vld [vmem:[#allocation2 + $0xd0] sm:$0xff]
        %v827 = vld [vmem:[#allocation2 + $0xd8] sm:$0xff]
        %v828 = vld [vmem:[#allocation2 + $0xe0] sm:$0xff]
        %v829 = vld [vmem:[#allocation2 + $0xe8] sm:$0xff]
        %v830 = vld [vmem:[#allocation2 + $0xf0] sm:$0xff]
        %v831 = vld [vmem:[#allocation2 + $0xf8] sm:$0xff]
        %v832 = vld [vmem:[#allocation2 + $0x100] sm:$0xff]
        %v833 = vld [vmem:[#allocation2 + $0x108] sm:$0xff]
        %v834 = vld [vmem:[#allocation2 + $0x110] sm:$0xff]
        %v835 = vld [vmem:[#allocation2 + $0x118] sm:$0xff]
        %v836 = vld [vmem:[#allocation2 + $0x120] sm:$0xff]
        %v837 = vld [vmem:[#allocation2 + $0x128] sm:$0xff]
        %v838 = vld [vmem:[#allocation2 + $0x130] sm:$0xff]
        %v839 = vld [vmem:[#allocation2 + $0x138] sm:$0xff]
        %v840 = vld [vmem:[#allocation2 + $0x140] sm:$0xff]
        %v841 = vld [vmem:[#allocation2 + $0x148] sm:$0xff]
        %v842 = vld [vmem:[#allocation2 + $0x150] sm:$0xff]
        %v843 = vld [vmem:[#allocation2 + $0x158] sm:$0xff]
        %v844 = vld [vmem:[#allocation2 + $0x160] sm:$0xff]
        %v845 = vld [vmem:[#allocation2 + $0x168] sm:$0xff]
        %v846 = vld [vmem:[#allocation2 + $0x170] sm:$0xff]
        %v847 = vld [vmem:[#allocation2 + $0x178] sm:$0xff]
        %v848 = vld [vmem:[#allocation2 + $0x180] sm:$0xff]
        %v849 = vld [vmem:[#allocation2 + $0x188] sm:$0xff]
        %v850 = vld [vmem:[#allocation2 + $0x190] sm:$0xff]
        %v851 = vld [vmem:[#allocation2 + $0x198] sm:$0xff]
        %v852 = vld [vmem:[#allocation2 + $0x1a0] sm:$0xff]
        %v853 = vld [vmem:[#allocation2 + $0x1a8] sm:$0xff]
        %v854 = vld [vmem:[#allocation2 + $0x1b0] sm:$0xff]
        %v855 = vld [vmem:[#allocation2 + $0x1b8] sm:$0xff]
        %v856 = vld [vmem:[#allocation2 + $0x1c0] sm:$0xff]
        %v857 = vld [vmem:[#allocation2 + $0x1c8] sm:$0xff]
        %v858 = vld [vmem:[#allocation2 + $0x1d0] sm:$0xff]
        %v859 = vld [vmem:[#allocation2 + $0x1d8] sm:$0xff]
        %v860 = vld [vmem:[#allocation2 + $0x1e0] sm:$0xff]
        %v861 = vld [vmem:[#allocation2 + $0x1e8] sm:$0xff]
        %v862 = vld [vmem:[#allocation2 + $0x1f0] sm:$0xff]
        %v863 = vld [vmem:[#allocation2 + $0x1f8] sm:$0xff]
        %v864 = vld [vmem:[#allocation2 + $0x200] sm:$0xff]
        %v865 = vld [vmem:[#allocation2 + $0x208] sm:$0xff]
        %v866 = vld [vmem:[#allocation2 + $0x210] sm:$0xff]
        %v867 = vld [vmem:[#allocation2 + $0x218] sm:$0xff]
        %v868 = vld [vmem:[#allocation2 + $0x220] sm:$0xff]
        %v869 = vld [vmem:[#allocation2 + $0x228] sm:$0xff]
        %v870 = vld [vmem:[#allocation2 + $0x230] sm:$0xff]
        %v871 = vld [vmem:[#allocation2 + $0x238] sm:$0xff]
        %v872 = vld [vmem:[#allocation2 + $0x240] sm:$0xff]
        %v873 = vld [vmem:[#allocation2 + $0x248] sm:$0xff]
        %v874 = vld [vmem:[#allocation2 + $0x250] sm:$0xff]
        %v875 = vld [vmem:[#allocation2 + $0x258] sm:$0xff]
        %v876 = vld [vmem:[#allocation2 + $0x260] sm:$0xff]
        %v877 = vld [vmem:[#allocation2 + $0x268] sm:$0xff]
        %v878 = vld [vmem:[#allocation2 + $0x270] sm:$0xff]
        %v879 = vld [vmem:[#allocation2 + $0x278] sm:$0xff]
        %v880 = vld [vmem:[#allocation2 + $0x280] sm:$0xff]
        %v881 = vld [vmem:[#allocation2 + $0x288] sm:$0xff]
        %v882 = vld [vmem:[#allocation2 + $0x290] sm:$0xff]
        %v883 = vld [vmem:[#allocation2 + $0x298] sm:$0xff]
        %v884 = vld [vmem:[#allocation2 + $0x2a0] sm:$0xff]
        %v885 = vld [vmem:[#allocation2 + $0x2a8] sm:$0xff]
        %v886 = vld [vmem:[#allocation2 + $0x2b0] sm:$0xff]
        %v887 = vld [vmem:[#allocation2 + $0x2b8] sm:$0xff]
        %v888 = vld [vmem:[#allocation2 + $0x2c0] sm:$0xff]
        %v889 = vld [vmem:[#allocation2 + $0x2c8] sm:$0xff]
        %v890 = vld [vmem:[#allocation2 + $0x2d0] sm:$0xff]
        %v891 = vld [vmem:[#allocation2 + $0x2d8] sm:$0xff]
        %v892 = vld [vmem:[#allocation2 + $0x2e0] sm:$0xff]
        %v893 = vld [vmem:[#allocation2 + $0x2e8] sm:$0xff]
        %v894 = vld [vmem:[#allocation2 + $0x2f0] sm:$0xff]
        %v895 = vld [vmem:[#allocation2 + $0x2f8] sm:$0xff]
        %v896 = vld [vmem:[#allocation2 + $0x300] sm:$0xff]
        %v897 = vld [vmem:[#allocation2 + $0x308] sm:$0xff]
        %v898 = vld [vmem:[#allocation2 + $0x310] sm:$0xff]
        %v899 = vld [vmem:[#allocation2 + $0x318] sm:$0xff]
        %v900 = vld [vmem:[#allocation2 + $0x320] sm:$0xff]
        %v901 = vld [vmem:[#allocation2 + $0x328] sm:$0xff]
        %v902 = vld [vmem:[#allocation2 + $0x330] sm:$0xff]
        %v903 = vld [vmem:[#allocation2 + $0x338] sm:$0xff]
        %v904 = vld [vmem:[#allocation2 + $0x340] sm:$0xff]
        %v905 = vld [vmem:[#allocation2 + $0x348] sm:$0xff]
        %v906 = vld [vmem:[#allocation2 + $0x350] sm:$0xff]
        %v907 = vld [vmem:[#allocation2 + $0x358] sm:$0xff]
        %v908 = vld [vmem:[#allocation2 + $0x360] sm:$0xff]
        %v909 = vld [vmem:[#allocation2 + $0x368] sm:$0xff]
        %v910 = vld [vmem:[#allocation2 + $0x370] sm:$0xff]
        %v911 = vld [vmem:[#allocation2 + $0x378] sm:$0xff]
        %v912 = vld [vmem:[#allocation2 + $0x380] sm:$0xff]
        %v913 = vld [vmem:[#allocation2 + $0x388] sm:$0xff]
        %v914 = vld [vmem:[#allocation2 + $0x390] sm:$0xff]
        %v915 = vld [vmem:[#allocation2 + $0x398] sm:$0xff]
        %v916 = vld [vmem:[#allocation2 + $0x3a0] sm:$0xff]
        %v917 = vld [vmem:[#allocation2 + $0x3a8] sm:$0xff]
        %v918 = vld [vmem:[#allocation2 + $0x3b0] sm:$0xff]
        %v919 = vld [vmem:[#allocation2 + $0x3b8] sm:$0xff]
        %v920 = vld [vmem:[#allocation2 + $0x3c0] sm:$0xff]
        %v921 = vld [vmem:[#allocation2 + $0x3c8] sm:$0xff]
        %v922 = vld [vmem:[#allocation2 + $0x3d0] sm:$0xff]
        %v923 = vld [vmem:[#allocation2 + $0x3d8] sm:$0xff]
        %v924 = vld [vmem:[#allocation2 + $0x3e0] sm:$0xff]
        %v925 = vld [vmem:[#allocation2 + $0x3e8] sm:$0xff]
        %v926 = vld [vmem:[#allocation2 + $0x3f0] sm:$0xff]
        %v927 = vld [vmem:[#allocation2 + $0x3f8] sm:$0xff]
        %v928 = vld [vmem:[%s4] sm:$0xf]
        %v930 = vlaneseq
        %v931 = vshrl.u32 %v930, 7
        %v932 = vsub.s32 0, %v931
        %v933 = vrot.slane %v928, %v932
        %v934 = vlaneseq
        %v935 = vshrl.u32 %v934, 7
        %v936 = vsub.s32 1, %v935
        %v937 = vrot.slane %v928, %v936
        %v938 = vlaneseq
        %v939 = vshrl.u32 %v938, 7
        %v940 = vsub.s32 2, %v939
        %v941 = vrot.slane %v928, %v940
        %v942 = vlaneseq
        %v943 = vshrl.u32 %v942, 7
        %v944 = vsub.s32 3, %v943
        %v945 = vrot.slane %v928, %v944
        %v1078 = vunpack.c.l.b16 %v800
        %v1079 = vunpack.c.h.b16 %v800
        %v1080 = vunpack.c.l.b16 %v801
        %v1081 = vunpack.c.h.b16 %v801
        %v1082 = vunpack.c.l.b16 %v802
        %v1083 = vunpack.c.h.b16 %v802
        %v1084 = vunpack.c.l.b16 %v803
        %v1085 = vunpack.c.h.b16 %v803
        %v1086 = vunpack.c.l.b16 %v804
        %v1087 = vunpack.c.h.b16 %v804
        %v1088 = vunpack.c.l.b16 %v805
        %v1089 = vunpack.c.h.b16 %v805
        %v1090 = vunpack.c.l.b16 %v806
        %v1091 = vunpack.c.h.b16 %v806
        %v1092 = vunpack.c.l.b16 %v807
        %v1093 = vunpack.c.h.b16 %v807
        %v1094 = vunpack.c.l.b16 %v808
        %v1095 = vunpack.c.h.b16 %v808
        %v1096 = vunpack.c.l.b16 %v809
        %v1097 = vunpack.c.h.b16 %v809
        %v1098 = vunpack.c.l.b16 %v810
        %v1099 = vunpack.c.h.b16 %v810
        %v1100 = vunpack.c.l.b16 %v811
        %v1101 = vunpack.c.h.b16 %v811
        %v1102 = vunpack.c.l.b16 %v812
        %v1103 = vunpack.c.h.b16 %v812
        %v1104 = vunpack.c.l.b16 %v813
        %v1105 = vunpack.c.h.b16 %v813
        %v1106 = vunpack.c.l.b16 %v814
        %v1107 = vunpack.c.h.b16 %v814
        %v1108 = vunpack.c.l.b16 %v815
        %v1109 = vunpack.c.h.b16 %v815
        %v1110 = vunpack.c.l.b16 %v816
        %v1111 = vunpack.c.h.b16 %v816
        %v1112 = vunpack.c.l.b16 %v817
        %v1113 = vunpack.c.h.b16 %v817
        %v1114 = vunpack.c.l.b16 %v818
        %v1115 = vunpack.c.h.b16 %v818
        %v1116 = vunpack.c.l.b16 %v819
        %v1117 = vunpack.c.h.b16 %v819
        %v1118 = vunpack.c.l.b16 %v820
        %v1119 = vunpack.c.h.b16 %v820
        %v1120 = vunpack.c.l.b16 %v821
        %v1121 = vunpack.c.h.b16 %v821
        %v1122 = vunpack.c.l.b16 %v822
        %v1123 = vunpack.c.h.b16 %v822
        %v1124 = vunpack.c.l.b16 %v823
        %v1125 = vunpack.c.h.b16 %v823
        %v1126 = vunpack.c.l.b16 %v824
        %v1127 = vunpack.c.h.b16 %v824
        %v1128 = vunpack.c.l.b16 %v825
        %v1129 = vunpack.c.h.b16 %v825
        %v1130 = vunpack.c.l.b16 %v826
        %v1131 = vunpack.c.h.b16 %v826
        %v1132 = vunpack.c.l.b16 %v827
        %v1133 = vunpack.c.h.b16 %v827
        %v1134 = vunpack.c.l.b16 %v828
        %v1135 = vunpack.c.h.b16 %v828
        %v1136 = vunpack.c.l.b16 %v829
        %v1137 = vunpack.c.h.b16 %v829
        %v1138 = vunpack.c.l.b16 %v830
        %v1139 = vunpack.c.h.b16 %v830
        %v1140 = vunpack.c.l.b16 %v831
        %v1141 = vunpack.c.h.b16 %v831
        %v1142 = vunpack.c.l.b16 %v832
        %v1143 = vunpack.c.h.b16 %v832
        %v1144 = vunpack.c.l.b16 %v833
        %v1145 = vunpack.c.h.b16 %v833
        %v1146 = vunpack.c.l.b16 %v834
        %v1147 = vunpack.c.h.b16 %v834
        %v1148 = vunpack.c.l.b16 %v835
        %v1149 = vunpack.c.h.b16 %v835
        %v1150 = vunpack.c.l.b16 %v836
        %v1151 = vunpack.c.h.b16 %v836
        %v1152 = vunpack.c.l.b16 %v837
        %v1153 = vunpack.c.h.b16 %v837
        %v1154 = vunpack.c.l.b16 %v838
        %v1155 = vunpack.c.h.b16 %v838
        %v1156 = vunpack.c.l.b16 %v839
        %v1157 = vunpack.c.h.b16 %v839
        %v1158 = vunpack.c.l.b16 %v840
        %v1159 = vunpack.c.h.b16 %v840
        %v1160 = vunpack.c.l.b16 %v841
        %v1161 = vunpack.c.h.b16 %v841
        %v1162 = vunpack.c.l.b16 %v842
        %v1163 = vunpack.c.h.b16 %v842
        %v1164 = vunpack.c.l.b16 %v843
        %v1165 = vunpack.c.h.b16 %v843
        %v1166 = vunpack.c.l.b16 %v844
        %v1167 = vunpack.c.h.b16 %v844
        %v1168 = vunpack.c.l.b16 %v845
        %v1169 = vunpack.c.h.b16 %v845
        %v1170 = vunpack.c.l.b16 %v846
        %v1171 = vunpack.c.h.b16 %v846
        %v1172 = vunpack.c.l.b16 %v847
        %v1173 = vunpack.c.h.b16 %v847
        %v1174 = vunpack.c.l.b16 %v848
        %v1175 = vunpack.c.h.b16 %v848
        %v1176 = vunpack.c.l.b16 %v849
        %v1177 = vunpack.c.h.b16 %v849
        %v1178 = vunpack.c.l.b16 %v850
        %v1179 = vunpack.c.h.b16 %v850
        %v1180 = vunpack.c.l.b16 %v851
        %v1181 = vunpack.c.h.b16 %v851
        %v1182 = vunpack.c.l.b16 %v852
        %v1183 = vunpack.c.h.b16 %v852
        %v1184 = vunpack.c.l.b16 %v853
        %v1185 = vunpack.c.h.b16 %v853
        %v1186 = vunpack.c.l.b16 %v854
        %v1187 = vunpack.c.h.b16 %v854
        %v1188 = vunpack.c.l.b16 %v855
        %v1189 = vunpack.c.h.b16 %v855
        %v1190 = vunpack.c.l.b16 %v856
        %v1191 = vunpack.c.h.b16 %v856
        %v1192 = vunpack.c.l.b16 %v857
        %v1193 = vunpack.c.h.b16 %v857
        %v1194 = vunpack.c.l.b16 %v858
        %v1195 = vunpack.c.h.b16 %v858
        %v1196 = vunpack.c.l.b16 %v859
        %v1197 = vunpack.c.h.b16 %v859
        %v1198 = vunpack.c.l.b16 %v860
        %v1199 = vunpack.c.h.b16 %v860
        %v1200 = vunpack.c.l.b16 %v861
        %v1201 = vunpack.c.h.b16 %v861
        %v1202 = vunpack.c.l.b16 %v862
        %v1203 = vunpack.c.h.b16 %v862
        %v1204 = vunpack.c.l.b16 %v863
        %v1205 = vunpack.c.h.b16 %v863
        %v1206 = vunpack.c.l.b16 %v864
        %v1207 = vunpack.c.h.b16 %v864
        %v1208 = vunpack.c.l.b16 %v865
        %v1209 = vunpack.c.h.b16 %v865
        %v1210 = vunpack.c.l.b16 %v866
        %v1211 = vunpack.c.h.b16 %v866
        %v1212 = vunpack.c.l.b16 %v867
        %v1213 = vunpack.c.h.b16 %v867
        %v1214 = vunpack.c.l.b16 %v868
        %v1215 = vunpack.c.h.b16 %v868
        %v1216 = vunpack.c.l.b16 %v869
        %v1217 = vunpack.c.h.b16 %v869
        %v1218 = vunpack.c.l.b16 %v870
        %v1219 = vunpack.c.h.b16 %v870
        %v1220 = vunpack.c.l.b16 %v871
        %v1221 = vunpack.c.h.b16 %v871
        %v1222 = vunpack.c.l.b16 %v872
        %v1223 = vunpack.c.h.b16 %v872
        %v1224 = vunpack.c.l.b16 %v873
        %v1225 = vunpack.c.h.b16 %v873
        %v1226 = vunpack.c.l.b16 %v874
        %v1227 = vunpack.c.h.b16 %v874
        %v1228 = vunpack.c.l.b16 %v875
        %v1229 = vunpack.c.h.b16 %v875
        %v1230 = vunpack.c.l.b16 %v876
        %v1231 = vunpack.c.h.b16 %v876
        %v1232 = vunpack.c.l.b16 %v877
        %v1233 = vunpack.c.h.b16 %v877
        %v1234 = vunpack.c.l.b16 %v878
        %v1235 = vunpack.c.h.b16 %v878
        %v1236 = vunpack.c.l.b16 %v879
        %v1237 = vunpack.c.h.b16 %v879
        %v1238 = vunpack.c.l.b16 %v880
        %v1239 = vunpack.c.h.b16 %v880
        %v1240 = vunpack.c.l.b16 %v881
        %v1241 = vunpack.c.h.b16 %v881
        %v1242 = vunpack.c.l.b16 %v882
        %v1243 = vunpack.c.h.b16 %v882
        %v1244 = vunpack.c.l.b16 %v883
        %v1245 = vunpack.c.h.b16 %v883
        %v1246 = vunpack.c.l.b16 %v884
        %v1247 = vunpack.c.h.b16 %v884
        %v1248 = vunpack.c.l.b16 %v885
        %v1249 = vunpack.c.h.b16 %v885
        %v1250 = vunpack.c.l.b16 %v886
        %v1251 = vunpack.c.h.b16 %v886
        %v1252 = vunpack.c.l.b16 %v887
        %v1253 = vunpack.c.h.b16 %v887
        %v1254 = vunpack.c.l.b16 %v888
        %v1255 = vunpack.c.h.b16 %v888
        %v1256 = vunpack.c.l.b16 %v889
        %v1257 = vunpack.c.h.b16 %v889
        %v1258 = vunpack.c.l.b16 %v890
        %v1259 = vunpack.c.h.b16 %v890
        %v1260 = vunpack.c.l.b16 %v891
        %v1261 = vunpack.c.h.b16 %v891
        %v1262 = vunpack.c.l.b16 %v892
        %v1263 = vunpack.c.h.b16 %v892
        %v1264 = vunpack.c.l.b16 %v893
        %v1265 = vunpack.c.h.b16 %v893
        %v1266 = vunpack.c.l.b16 %v894
        %v1267 = vunpack.c.h.b16 %v894
        %v1268 = vunpack.c.l.b16 %v895
        %v1269 = vunpack.c.h.b16 %v895
        %v1270 = vunpack.c.l.b16 %v896
        %v1271 = vunpack.c.h.b16 %v896
        %v1272 = vunpack.c.l.b16 %v897
        %v1273 = vunpack.c.h.b16 %v897
        %v1274 = vunpack.c.l.b16 %v898
        %v1275 = vunpack.c.h.b16 %v898
        %v1276 = vunpack.c.l.b16 %v899
        %v1277 = vunpack.c.h.b16 %v899
        %v1278 = vunpack.c.l.b16 %v900
        %v1279 = vunpack.c.h.b16 %v900
        %v1280 = vunpack.c.l.b16 %v901
        %v1281 = vunpack.c.h.b16 %v901
        %v1282 = vunpack.c.l.b16 %v902
        %v1283 = vunpack.c.h.b16 %v902
        %v1284 = vunpack.c.l.b16 %v903
        %v1285 = vunpack.c.h.b16 %v903
        %v1286 = vunpack.c.l.b16 %v904
        %v1287 = vunpack.c.h.b16 %v904
        %v1288 = vunpack.c.l.b16 %v905
        %v1289 = vunpack.c.h.b16 %v905
        %v1290 = vunpack.c.l.b16 %v906
        %v1291 = vunpack.c.h.b16 %v906
        %v1292 = vunpack.c.l.b16 %v907
        %v1293 = vunpack.c.h.b16 %v907
        %v1294 = vunpack.c.l.b16 %v908
        %v1295 = vunpack.c.h.b16 %v908
        %v1296 = vunpack.c.l.b16 %v909
        %v1297 = vunpack.c.h.b16 %v909
        %v1298 = vunpack.c.l.b16 %v910
        %v1299 = vunpack.c.h.b16 %v910
        %v1300 = vunpack.c.l.b16 %v911
        %v1301 = vunpack.c.h.b16 %v911
        %v1302 = vunpack.c.l.b16 %v912
        %v1303 = vunpack.c.h.b16 %v912
        %v1304 = vunpack.c.l.b16 %v913
        %v1305 = vunpack.c.h.b16 %v913
        %v1306 = vunpack.c.l.b16 %v914
        %v1307 = vunpack.c.h.b16 %v914
        %v1308 = vunpack.c.l.b16 %v915
        %v1309 = vunpack.c.h.b16 %v915
        %v1310 = vunpack.c.l.b16 %v916
        %v1311 = vunpack.c.h.b16 %v916
        %v1312 = vunpack.c.l.b16 %v917
        %v1313 = vunpack.c.h.b16 %v917
        %v1314 = vunpack.c.l.b16 %v918
        %v1315 = vunpack.c.h.b16 %v918
        %v1316 = vunpack.c.l.b16 %v919
        %v1317 = vunpack.c.h.b16 %v919
        %v1318 = vunpack.c.l.b16 %v920
        %v1319 = vunpack.c.h.b16 %v920
        %v1320 = vunpack.c.l.b16 %v921
        %v1321 = vunpack.c.h.b16 %v921
        %v1322 = vunpack.c.l.b16 %v922
        %v1323 = vunpack.c.h.b16 %v922
        %v1324 = vunpack.c.l.b16 %v923
        %v1325 = vunpack.c.h.b16 %v923
        %v1326 = vunpack.c.l.b16 %v924
        %v1327 = vunpack.c.h.b16 %v924
        %v1328 = vunpack.c.l.b16 %v925
        %v1329 = vunpack.c.h.b16 %v925
        %v1330 = vunpack.c.l.b16 %v926
        %v1331 = vunpack.c.h.b16 %v926
        %v1332 = vunpack.c.l.b16 %v927
        %v1333 = vunpack.c.h.b16 %v927
        %v1334 = vpack.c.b16 %v1082, %v1078
        %v1335 = vpack.c.b16 %v1083, %v1079
        %v1336 = vpack.c.b16 %v1084, %v1080
        %v1337 = vpack.c.b16 %v1085, %v1081
        %v1338 = vpack.c.b16 %v1090, %v1086
        %v1339 = vpack.c.b16 %v1091, %v1087
        %v1340 = vpack.c.b16 %v1092, %v1088
        %v1341 = vpack.c.b16 %v1093, %v1089
        %v1342 = vpack.c.b16 %v1098, %v1094
        %v1343 = vpack.c.b16 %v1099, %v1095
        %v1344 = vpack.c.b16 %v1100, %v1096
        %v1345 = vpack.c.b16 %v1101, %v1097
        %v1346 = vpack.c.b16 %v1106, %v1102
        %v1347 = vpack.c.b16 %v1107, %v1103
        %v1348 = vpack.c.b16 %v1108, %v1104
        %v1349 = vpack.c.b16 %v1109, %v1105
        %v1350 = vpack.c.b16 %v1114, %v1110
        %v1351 = vpack.c.b16 %v1115, %v1111
        %v1352 = vpack.c.b16 %v1116, %v1112
        %v1353 = vpack.c.b16 %v1117, %v1113
        %v1354 = vpack.c.b16 %v1122, %v1118
        %v1355 = vpack.c.b16 %v1123, %v1119
        %v1356 = vpack.c.b16 %v1124, %v1120
        %v1357 = vpack.c.b16 %v1125, %v1121
        %v1358 = vpack.c.b16 %v1130, %v1126
        %v1359 = vpack.c.b16 %v1131, %v1127
        %v1360 = vpack.c.b16 %v1132, %v1128
        %v1361 = vpack.c.b16 %v1133, %v1129
        %v1362 = vpack.c.b16 %v1138, %v1134
        %v1363 = vpack.c.b16 %v1139, %v1135
        %v1364 = vpack.c.b16 %v1140, %v1136
        %v1365 = vpack.c.b16 %v1141, %v1137
        %v1366 = vpack.c.b16 %v1146, %v1142
        %v1367 = vpack.c.b16 %v1147, %v1143
        %v1368 = vpack.c.b16 %v1148, %v1144
        %v1369 = vpack.c.b16 %v1149, %v1145
        %v1370 = vpack.c.b16 %v1154, %v1150
        %v1371 = vpack.c.b16 %v1155, %v1151
        %v1372 = vpack.c.b16 %v1156, %v1152
        %v1373 = vpack.c.b16 %v1157, %v1153
        %v1374 = vpack.c.b16 %v1162, %v1158
        %v1375 = vpack.c.b16 %v1163, %v1159
        %v1376 = vpack.c.b16 %v1164, %v1160
        %v1377 = vpack.c.b16 %v1165, %v1161
        %v1378 = vpack.c.b16 %v1170, %v1166
        %v1379 = vpack.c.b16 %v1171, %v1167
        %v1380 = vpack.c.b16 %v1172, %v1168
        %v1381 = vpack.c.b16 %v1173, %v1169
        %v1382 = vpack.c.b16 %v1178, %v1174
        %v1383 = vpack.c.b16 %v1179, %v1175
        %v1384 = vpack.c.b16 %v1180, %v1176
        %v1385 = vpack.c.b16 %v1181, %v1177
        %v1386 = vpack.c.b16 %v1186, %v1182
        %v1387 = vpack.c.b16 %v1187, %v1183
        %v1388 = vpack.c.b16 %v1188, %v1184
        %v1389 = vpack.c.b16 %v1189, %v1185
        %v1390 = vpack.c.b16 %v1194, %v1190
        %v1391 = vpack.c.b16 %v1195, %v1191
        %v1392 = vpack.c.b16 %v1196, %v1192
        %v1393 = vpack.c.b16 %v1197, %v1193
        %v1394 = vpack.c.b16 %v1202, %v1198
        %v1395 = vpack.c.b16 %v1203, %v1199
        %v1396 = vpack.c.b16 %v1204, %v1200
        %v1397 = vpack.c.b16 %v1205, %v1201
        %v1398 = vpack.c.b16 %v1210, %v1206
        %v1399 = vpack.c.b16 %v1211, %v1207
        %v1400 = vpack.c.b16 %v1212, %v1208
        %v1401 = vpack.c.b16 %v1213, %v1209
        %v1402 = vpack.c.b16 %v1218, %v1214
        %v1403 = vpack.c.b16 %v1219, %v1215
        %v1404 = vpack.c.b16 %v1220, %v1216
        %v1405 = vpack.c.b16 %v1221, %v1217
        %v1406 = vpack.c.b16 %v1226, %v1222
        %v1407 = vpack.c.b16 %v1227, %v1223
        %v1408 = vpack.c.b16 %v1228, %v1224
        %v1409 = vpack.c.b16 %v1229, %v1225
        %v1410 = vpack.c.b16 %v1234, %v1230
        %v1411 = vpack.c.b16 %v1235, %v1231
        %v1412 = vpack.c.b16 %v1236, %v1232
        %v1413 = vpack.c.b16 %v1237, %v1233
        %v1414 = vpack.c.b16 %v1242, %v1238
        %v1415 = vpack.c.b16 %v1243, %v1239
        %v1416 = vpack.c.b16 %v1244, %v1240
        %v1417 = vpack.c.b16 %v1245, %v1241
        %v1418 = vpack.c.b16 %v1250, %v1246
        %v1419 = vpack.c.b16 %v1251, %v1247
        %v1420 = vpack.c.b16 %v1252, %v1248
        %v1421 = vpack.c.b16 %v1253, %v1249
        %v1422 = vpack.c.b16 %v1258, %v1254
        %v1423 = vpack.c.b16 %v1259, %v1255
        %v1424 = vpack.c.b16 %v1260, %v1256
        %v1425 = vpack.c.b16 %v1261, %v1257
        %v1426 = vpack.c.b16 %v1266, %v1262
        %v1427 = vpack.c.b16 %v1267, %v1263
        %v1428 = vpack.c.b16 %v1268, %v1264
        %v1429 = vpack.c.b16 %v1269, %v1265
        %v1430 = vpack.c.b16 %v1274, %v1270
        %v1431 = vpack.c.b16 %v1275, %v1271
        %v1432 = vpack.c.b16 %v1276, %v1272
        %v1433 = vpack.c.b16 %v1277, %v1273
        %v1434 = vpack.c.b16 %v1282, %v1278
        %v1435 = vpack.c.b16 %v1283, %v1279
        %v1436 = vpack.c.b16 %v1284, %v1280
        %v1437 = vpack.c.b16 %v1285, %v1281
        %v1438 = vpack.c.b16 %v1290, %v1286
        %v1439 = vpack.c.b16 %v1291, %v1287
        %v1440 = vpack.c.b16 %v1292, %v1288
        %v1441 = vpack.c.b16 %v1293, %v1289
        %v1442 = vpack.c.b16 %v1298, %v1294
        %v1443 = vpack.c.b16 %v1299, %v1295
        %v1444 = vpack.c.b16 %v1300, %v1296
        %v1445 = vpack.c.b16 %v1301, %v1297
        %v1446 = vpack.c.b16 %v1306, %v1302
        %v1447 = vpack.c.b16 %v1307, %v1303
        %v1448 = vpack.c.b16 %v1308, %v1304
        %v1449 = vpack.c.b16 %v1309, %v1305
        %v1450 = vpack.c.b16 %v1314, %v1310
        %v1451 = vpack.c.b16 %v1315, %v1311
        %v1452 = vpack.c.b16 %v1316, %v1312
        %v1453 = vpack.c.b16 %v1317, %v1313
        %v1454 = vpack.c.b16 %v1322, %v1318
        %v1455 = vpack.c.b16 %v1323, %v1319
        %v1456 = vpack.c.b16 %v1324, %v1320
        %v1457 = vpack.c.b16 %v1325, %v1321
        %v1458 = vpack.c.b16 %v1330, %v1326
        %v1459 = vpack.c.b16 %v1331, %v1327
        %v1460 = vpack.c.b16 %v1332, %v1328
        %v1461 = vpack.c.b16 %v1333, %v1329
        %1590 = vmatprep.subr.bf16.mxu0 %v1335
        %1591 = vmatpush1.bf16.msra.mxu0 %v1334
        %1592 = vmatprep.subr.bf16.mxu0 %v1339
        %1593 = vmatpush1.bf16.msra.mxu0 %v1338
        %1594 = vmatprep.subr.bf16.mxu0 %v1343
        %1595 = vmatpush1.bf16.msra.mxu0 %v1342
        %1596 = vmatprep.subr.bf16.mxu0 %v1347
        %1597 = vmatpush1.bf16.msra.mxu0 %v1346
        %1598 = vmatprep.subr.bf16.mxu0 %v1351
        %1599 = vmatpush1.bf16.msra.mxu0 %v1350
        %1600 = vmatprep.subr.bf16.mxu0 %v1355
        %1601 = vmatpush1.bf16.msra.mxu0 %v1354
        %1602 = vmatprep.subr.bf16.mxu0 %v1359
        %1603 = vmatpush1.bf16.msra.mxu0 %v1358
        %1604 = vmatprep.subr.bf16.mxu0 %v1363
        %1605 = vmatpush1.bf16.msra.mxu0 %v1362
        %1606 = vmatprep.subr.bf16.mxu0 %v1367
        %1607 = vmatpush1.bf16.msra.mxu0 %v1366
        %1608 = vmatprep.subr.bf16.mxu0 %v1371
        %1609 = vmatpush1.bf16.msra.mxu0 %v1370
        %1610 = vmatprep.subr.bf16.mxu0 %v1375
        %1611 = vmatpush1.bf16.msra.mxu0 %v1374
        %1612 = vmatprep.subr.bf16.mxu0 %v1379
        %1613 = vmatpush1.bf16.msra.mxu0 %v1378
        %1614 = vmatprep.subr.bf16.mxu0 %v1383
        %1615 = vmatpush1.bf16.msra.mxu0 %v1382
        %1616 = vmatprep.subr.bf16.mxu0 %v1387
        %1617 = vmatpush1.bf16.msra.mxu0 %v1386
        %1618 = vmatprep.subr.bf16.mxu0 %v1391
        %1619 = vmatpush1.bf16.msra.mxu0 %v1390
        %1620 = vmatprep.subr.bf16.mxu0 %v1395
        %1621 = vmatpush1.bf16.msra.mxu0 %v1394
        %1622 = vmatprep.mubr.bf16.mxu0 %v769
        %1623 = vmatmul.mubr.bf16.gmra.mrb[0].mxu0 %v768
        %v1624 = vpop.f32.mrb[0].mxu0
        %v1625 = vadd.f32 %v933, %v1624
        %v1626 = vpop.f32.mrb[0].mxu0
        %v1627 = vadd.f32 %v937, %v1626
        %v1628 = vpop.f32.mrb[0].mxu0
        %v1629 = vadd.f32 %v933, %v1628
        %v1630 = vpop.f32.mrb[0].mxu0
        %v1631 = vadd.f32 %v937, %v1630
        %1632 = vmatprep.mubr.bf16.mxu0 %v773
        %1633 = vmatmul.mubr.bf16.gmra.mrb[0].mxu0 %v772
        %v1634 = vpop.f32.mrb[0].mxu0
        %v1635 = vadd.f32 %v933, %v1634
        %v1636 = vpop.f32.mrb[0].mxu0
        %v1637 = vadd.f32 %v937, %v1636
        %v1638 = vpop.f32.mrb[0].mxu0
        %v1639 = vadd.f32 %v933, %v1638
        %v1640 = vpop.f32.mrb[0].mxu0
        %v1641 = vadd.f32 %v937, %v1640
        %1642 = vmatprep.mubr.bf16.mxu0 %v777
        %1643 = vmatmul.mubr.bf16.gmra.mrb[0].mxu0 %v776
        %v1644 = vpop.f32.mrb[0].mxu0
        %v1645 = vadd.f32 %v933, %v1644
        %v1646 = vpop.f32.mrb[0].mxu0
        %v1647 = vadd.f32 %v937, %v1646
        %v1648 = vpop.f32.mrb[0].mxu0
        %v1649 = vadd.f32 %v933, %v1648
        %v1650 = vpop.f32.mrb[0].mxu0
        %v1651 = vadd.f32 %v937, %v1650
        %1652 = vmatprep.mubr.bf16.mxu0 %v781
        %1653 = vmatmul.mubr.bf16.gmra.mrb[0].mxu0 %v780
        %v1654 = vpop.f32.mrb[0].mxu0
        %v1655 = vadd.f32 %v933, %v1654
        %v1656 = vpop.f32.mrb[0].mxu0
        %v1657 = vadd.f32 %v937, %v1656
        %v1658 = vpop.f32.mrb[0].mxu0
        %v1659 = vadd.f32 %v933, %v1658
        %v1660 = vpop.f32.mrb[0].mxu0
        %v1661 = vadd.f32 %v937, %v1660
        %1662 = vmatprep.mubr.bf16.mxu0 %v785
        %1663 = vmatmul.mubr.bf16.gmra.mrb[0].mxu0 %v784
        %v1664 = vpop.f32.mrb[0].mxu0
        %v1665 = vadd.f32 %v933, %v1664
        %v1666 = vpop.f32.mrb[0].mxu0
        %v1667 = vadd.f32 %v937, %v1666
        %v1668 = vpop.f32.mrb[0].mxu0
        %v1669 = vadd.f32 %v933, %v1668
        %v1670 = vpop.f32.mrb[0].mxu0
        %v1671 = vadd.f32 %v937, %v1670
        %1672 = vmatprep.mubr.bf16.mxu0 %v789
        %1673 = vmatmul.mubr.bf16.gmra.mrb[0].mxu0 %v788
        %v1674 = vpop.f32.mrb[0].mxu0
        %v1675 = vadd.f32 %v933, %v1674
        %v1676 = vpop.f32.mrb[0].mxu0
        %v1677 = vadd.f32 %v937, %v1676
        %v1678 = vpop.f32.mrb[0].mxu0
        %v1679 = vadd.f32 %v933, %v1678
        %v1680 = vpop.f32.mrb[0].mxu0
        %v1681 = vadd.f32 %v937, %v1680
        %1682 = vmatprep.mubr.bf16.mxu0 %v793
        %1683 = vmatmul.mubr.bf16.gmra.mrb[0].mxu0 %v792
        %v1684 = vpop.f32.mrb[0].mxu0
        %v1685 = vadd.f32 %v933, %v1684
        %v1686 = vpop.f32.mrb[0].mxu0
        %v1687 = vadd.f32 %v937, %v1686
        %v1688 = vpop.f32.mrb[0].mxu0
        %v1689 = vadd.f32 %v933, %v1688
        %v1690 = vpop.f32.mrb[0].mxu0
        %v1691 = vadd.f32 %v937, %v1690
        %1692 = vmatprep.mubr.bf16.mxu0 %v797
        %1693 = vmatmul.mubr.bf16.gmra.mrb[0].mxu0 %v796
        %v1694 = vpop.f32.mrb[0].mxu0
        %v1695 = vadd.f32 %v933, %v1694
        %v1696 = vpop.f32.mrb[0].mxu0
        %v1697 = vadd.f32 %v937, %v1696
        %v1698 = vpop.f32.mrb[0].mxu0
        %v1699 = vadd.f32 %v933, %v1698
        %v1700 = vpop.f32.mrb[0].mxu0
        %v1701 = vadd.f32 %v937, %v1700
        %1702 = vdwg.mxu0
        %1703 = vmatprep.subr.bf16.mxu0 %v1399
        %1704 = vmatpush1.bf16.msra.mxu0 %v1398
        %1705 = vmatprep.subr.bf16.mxu0 %v1403
        %1706 = vmatpush1.bf16.msra.mxu0 %v1402
        %1707 = vmatprep.subr.bf16.mxu0 %v1407
        %1708 = vmatpush1.bf16.msra.mxu0 %v1406
        %1709 = vmatprep.subr.bf16.mxu0 %v1411
        %1710 = vmatpush1.bf16.msra.mxu0 %v1410
        %1711 = vmatprep.subr.bf16.mxu0 %v1415
        %1712 = vmatpush1.bf16.msra.mxu0 %v1414
        %1713 = vmatprep.subr.bf16.mxu0 %v1419
        %1714 = vmatpush1.bf16.msra.mxu0 %v1418
        %1715 = vmatprep.subr.bf16.mxu0 %v1423
        %1716 = vmatpush1.bf16.msra.mxu0 %v1422
        %1717 = vmatprep.subr.bf16.mxu0 %v1427
        %1718 = vmatpush1.bf16.msra.mxu0 %v1426
        %1719 = vmatprep.subr.bf16.mxu0 %v1431
        %1720 = vmatpush1.bf16.msra.mxu0 %v1430
        %1721 = vmatprep.subr.bf16.mxu0 %v1435
        %1722 = vmatpush1.bf16.msra.mxu0 %v1434
        %1723 = vmatprep.subr.bf16.mxu0 %v1439
        %1724 = vmatpush1.bf16.msra.mxu0 %v1438
        %1725 = vmatprep.subr.bf16.mxu0 %v1443
        %1726 = vmatpush1.bf16.msra.mxu0 %v1442
        %1727 = vmatprep.subr.bf16.mxu0 %v1447
        %1728 = vmatpush1.bf16.msra.mxu0 %v1446
        %1729 = vmatprep.subr.bf16.mxu0 %v1451
        %1730 = vmatpush1.bf16.msra.mxu0 %v1450
        %1731 = vmatprep.subr.bf16.mxu0 %v1455
        %1732 = vmatpush1.bf16.msra.mxu0 %v1454
        %1733 = vmatprep.subr.bf16.mxu0 %v1459
        %1734 = vmatpush1.bf16.msra.mxu0 %v1458
        %1735 = vmatprep.mubr.bf16.mxu0 %v771
        %1736 = vmatmul.mubr.bf16.gmra.mrb[0].mxu0 %v770
        %v1737 = vpop.f32.mrb[0].mxu0
        %v1738 = vadd.f32 %v1625, %v1737
        %v1739 = vpop.f32.mrb[0].mxu0
        %v1740 = vadd.f32 %v1627, %v1739
        %v1741 = vpop.f32.mrb[0].mxu0
        %v1742 = vadd.f32 %v1629, %v1741
        %v1743 = vpop.f32.mrb[0].mxu0
        %v1744 = vadd.f32 %v1631, %v1743
        %1745 = vmatprep.mubr.bf16.mxu0 %v775
        %1746 = vmatmul.mubr.bf16.gmra.mrb[0].mxu0 %v774
        %v1747 = vpop.f32.mrb[0].mxu0
        %v1748 = vadd.f32 %v1635, %v1747
        %v1749 = vpop.f32.mrb[0].mxu0
        %v1750 = vadd.f32 %v1637, %v1749
        %v1751 = vpop.f32.mrb[0].mxu0
        %v1752 = vadd.f32 %v1639, %v1751
        %v1753 = vpop.f32.mrb[0].mxu0
        %v1754 = vadd.f32 %v1641, %v1753
        %1755 = vmatprep.mubr.bf16.mxu0 %v779
        %1756 = vmatmul.mubr.bf16.gmra.mrb[0].mxu0 %v778
        %v1757 = vpop.f32.mrb[0].mxu0
        %v1758 = vadd.f32 %v1645, %v1757
        %v1759 = vpop.f32.mrb[0].mxu0
        %v1760 = vadd.f32 %v1647, %v1759
        %v1761 = vpop.f32.mrb[0].mxu0
        %v1762 = vadd.f32 %v1649, %v1761
        %v1763 = vpop.f32.mrb[0].mxu0
        %v1764 = vadd.f32 %v1651, %v1763
        %1765 = vmatprep.mubr.bf16.mxu0 %v783
        %1766 = vmatmul.mubr.bf16.gmra.mrb[0].mxu0 %v782
        %v1767 = vpop.f32.mrb[0].mxu0
        %v1768 = vadd.f32 %v1655, %v1767
        %v1769 = vpop.f32.mrb[0].mxu0
        %v1770 = vadd.f32 %v1657, %v1769
        %v1771 = vpop.f32.mrb[0].mxu0
        %v1772 = vadd.f32 %v1659, %v1771
        %v1773 = vpop.f32.mrb[0].mxu0
        %v1774 = vadd.f32 %v1661, %v1773
        %1775 = vmatprep.mubr.bf16.mxu0 %v787
        %1776 = vmatmul.mubr.bf16.gmra.mrb[0].mxu0 %v786
        %v1777 = vpop.f32.mrb[0].mxu0
        %v1778 = vadd.f32 %v1665, %v1777
        %v1779 = vpop.f32.mrb[0].mxu0
        %v1780 = vadd.f32 %v1667, %v1779
        %v1781 = vpop.f32.mrb[0].mxu0
        %v1782 = vadd.f32 %v1669, %v1781
        %v1783 = vpop.f32.mrb[0].mxu0
        %v1784 = vadd.f32 %v1671, %v1783
        %1785 = vmatprep.mubr.bf16.mxu0 %v791
        %1786 = vmatmul.mubr.bf16.gmra.mrb[0].mxu0 %v790
        %v1787 = vpop.f32.mrb[0].mxu0
        %v1788 = vadd.f32 %v1675, %v1787
        %v1789 = vpop.f32.mrb[0].mxu0
        %v1790 = vadd.f32 %v1677, %v1789
        %v1791 = vpop.f32.mrb[0].mxu0
        %v1792 = vadd.f32 %v1679, %v1791
        %v1793 = vpop.f32.mrb[0].mxu0
        %v1794 = vadd.f32 %v1681, %v1793
        %1795 = vmatprep.mubr.bf16.mxu0 %v795
        %1796 = vmatmul.mubr.bf16.gmra.mrb[0].mxu0 %v794
        %v1797 = vpop.f32.mrb[0].mxu0
        %v1798 = vadd.f32 %v1685, %v1797
        %v1799 = vpop.f32.mrb[0].mxu0
        %v1800 = vadd.f32 %v1687, %v1799
        %v1801 = vpop.f32.mrb[0].mxu0
        %v1802 = vadd.f32 %v1689, %v1801
        %v1803 = vpop.f32.mrb[0].mxu0
        %v1804 = vadd.f32 %v1691, %v1803
        %1805 = vmatprep.mubr.bf16.mxu0 %v799
        %1806 = vmatmul.mubr.bf16.gmra.mrb[0].mxu0 %v798
        %v1807 = vpop.f32.mrb[0].mxu0
        %v1808 = vadd.f32 %v1695, %v1807
        %v1809 = vpop.f32.mrb[0].mxu0
        %v1810 = vadd.f32 %v1697, %v1809
        %v1811 = vpop.f32.mrb[0].mxu0
        %v1812 = vadd.f32 %v1699, %v1811
        %v1813 = vpop.f32.mrb[0].mxu0
        %v1814 = vadd.f32 %v1701, %v1813
        %1815 = vdwg.mxu0
        %1816 = vmatprep.subr.bf16.mxu0 %v1337
        %1817 = vmatpush1.bf16.msra.mxu0 %v1336
        %1818 = vmatprep.subr.bf16.mxu0 %v1341
        %1819 = vmatpush1.bf16.msra.mxu0 %v1340
        %1820 = vmatprep.subr.bf16.mxu0 %v1345
        %1821 = vmatpush1.bf16.msra.mxu0 %v1344
        %1822 = vmatprep.subr.bf16.mxu0 %v1349
        %1823 = vmatpush1.bf16.msra.mxu0 %v1348
        %1824 = vmatprep.subr.bf16.mxu0 %v1353
        %1825 = vmatpush1.bf16.msra.mxu0 %v1352
        %1826 = vmatprep.subr.bf16.mxu0 %v1357
        %1827 = vmatpush1.bf16.msra.mxu0 %v1356
        %1828 = vmatprep.subr.bf16.mxu0 %v1361
        %1829 = vmatpush1.bf16.msra.mxu0 %v1360
        %1830 = vmatprep.subr.bf16.mxu0 %v1365
        %1831 = vmatpush1.bf16.msra.mxu0 %v1364
        %1832 = vmatprep.subr.bf16.mxu0 %v1369
        %1833 = vmatpush1.bf16.msra.mxu0 %v1368
        %1834 = vmatprep.subr.bf16.mxu0 %v1373
        %1835 = vmatpush1.bf16.msra.mxu0 %v1372
        %1836 = vmatprep.subr.bf16.mxu0 %v1377
        %1837 = vmatpush1.bf16.msra.mxu0 %v1376
        %1838 = vmatprep.subr.bf16.mxu0 %v1381
        %1839 = vmatpush1.bf16.msra.mxu0 %v1380
        %1840 = vmatprep.subr.bf16.mxu0 %v1385
        %1841 = vmatpush1.bf16.msra.mxu0 %v1384
        %1842 = vmatprep.subr.bf16.mxu0 %v1389
        %1843 = vmatpush1.bf16.msra.mxu0 %v1388
        %1844 = vmatprep.subr.bf16.mxu0 %v1393
        %1845 = vmatpush1.bf16.msra.mxu0 %v1392
        %1846 = vmatprep.subr.bf16.mxu0 %v1397
        %1847 = vmatpush1.bf16.msra.mxu0 %v1396
        %1848 = vmatprep.mubr.bf16.mxu0 %v769
        %1849 = vmatmul.mubr.bf16.gmra.mrb[0].mxu0 %v768
        %v1850 = vpop.f32.mrb[0].mxu0
        %v1851 = vadd.f32 %v941, %v1850
        %v1852 = vpop.f32.mrb[0].mxu0
        %v1853 = vadd.f32 %v945, %v1852
        %v1854 = vpop.f32.mrb[0].mxu0
        %v1855 = vadd.f32 %v941, %v1854
        %v1856 = vpop.f32.mrb[0].mxu0
        %v1857 = vadd.f32 %v945, %v1856
        %1858 = vmatprep.mubr.bf16.mxu0 %v773
        %1859 = vmatmul.mubr.bf16.gmra.mrb[0].mxu0 %v772
        %v1860 = vpop.f32.mrb[0].mxu0
        %v1861 = vadd.f32 %v941, %v1860
        %v1862 = vpop.f32.mrb[0].mxu0
        %v1863 = vadd.f32 %v945, %v1862
        %v1864 = vpop.f32.mrb[0].mxu0
        %v1865 = vadd.f32 %v941, %v1864
        %v1866 = vpop.f32.mrb[0].mxu0
        %v1867 = vadd.f32 %v945, %v1866
        %1868 = vmatprep.mubr.bf16.mxu0 %v777
        %1869 = vmatmul.mubr.bf16.gmra.mrb[0].mxu0 %v776
        %v1870 = vpop.f32.mrb[0].mxu0
        %v1871 = vadd.f32 %v941, %v1870
        %v1872 = vpop.f32.mrb[0].mxu0
        %v1873 = vadd.f32 %v945, %v1872
        %v1874 = vpop.f32.mrb[0].mxu0
        %v1875 = vadd.f32 %v941, %v1874
        %v1876 = vpop.f32.mrb[0].mxu0
        %v1877 = vadd.f32 %v945, %v1876
        %1878 = vmatprep.mubr.bf16.mxu0 %v781
        %1879 = vmatmul.mubr.bf16.gmra.mrb[0].mxu0 %v780
        %v1880 = vpop.f32.mrb[0].mxu0
        %v1881 = vadd.f32 %v941, %v1880
        %v1882 = vpop.f32.mrb[0].mxu0
        %v1883 = vadd.f32 %v945, %v1882
        %v1884 = vpop.f32.mrb[0].mxu0
        %v1885 = vadd.f32 %v941, %v1884
        %v1886 = vpop.f32.mrb[0].mxu0
        %v1887 = vadd.f32 %v945, %v1886
        %1888 = vmatprep.mubr.bf16.mxu0 %v785
        %1889 = vmatmul.mubr.bf16.gmra.mrb[0].mxu0 %v784
        %v1890 = vpop.f32.mrb[0].mxu0
        %v1891 = vadd.f32 %v941, %v1890
        %v1892 = vpop.f32.mrb[0].mxu0
        %v1893 = vadd.f32 %v945, %v1892
        %v1894 = vpop.f32.mrb[0].mxu0
        %v1895 = vadd.f32 %v941, %v1894
        %v1896 = vpop.f32.mrb[0].mxu0
        %v1897 = vadd.f32 %v945, %v1896
        %1898 = vmatprep.mubr.bf16.mxu0 %v789
        %1899 = vmatmul.mubr.bf16.gmra.mrb[0].mxu0 %v788
        %v1900 = vpop.f32.mrb[0].mxu0
        %v1901 = vadd.f32 %v941, %v1900
        %v1902 = vpop.f32.mrb[0].mxu0
        %v1903 = vadd.f32 %v945, %v1902
        %v1904 = vpop.f32.mrb[0].mxu0
        %v1905 = vadd.f32 %v941, %v1904
        %v1906 = vpop.f32.mrb[0].mxu0
        %v1907 = vadd.f32 %v945, %v1906
        %1908 = vmatprep.mubr.bf16.mxu0 %v793
        %1909 = vmatmul.mubr.bf16.gmra.mrb[0].mxu0 %v792
        %v1910 = vpop.f32.mrb[0].mxu0
        %v1911 = vadd.f32 %v941, %v1910
        %v1912 = vpop.f32.mrb[0].mxu0
        %v1913 = vadd.f32 %v945, %v1912
        %v1914 = vpop.f32.mrb[0].mxu0
        %v1915 = vadd.f32 %v941, %v1914
        %v1916 = vpop.f32.mrb[0].mxu0
        %v1917 = vadd.f32 %v945, %v1916
        %1918 = vmatprep.mubr.bf16.mxu0 %v797
        %1919 = vmatmul.mubr.bf16.gmra.mrb[0].mxu0 %v796
        %v1920 = vpop.f32.mrb[0].mxu0
        %v1921 = vadd.f32 %v941, %v1920
        %v1922 = vpop.f32.mrb[0].mxu0
        %v1923 = vadd.f32 %v945, %v1922
        %v1924 = vpop.f32.mrb[0].mxu0
        %v1925 = vadd.f32 %v941, %v1924
        %v1926 = vpop.f32.mrb[0].mxu0
        %v1927 = vadd.f32 %v945, %v1926
        %1928 = vdwg.mxu0
        %1929 = vmatprep.subr.bf16.mxu0 %v1401
        %1930 = vmatpush1.bf16.msra.mxu0 %v1400
        %1931 = vmatprep.subr.bf16.mxu0 %v1405
        %1932 = vmatpush1.bf16.msra.mxu0 %v1404
        %1933 = vmatprep.subr.bf16.mxu0 %v1409
        %1934 = vmatpush1.bf16.msra.mxu0 %v1408
        %1935 = vmatprep.subr.bf16.mxu0 %v1413
        %1936 = vmatpush1.bf16.msra.mxu0 %v1412
        %1937 = vmatprep.subr.bf16.mxu0 %v1417
        %1938 = vmatpush1.bf16.msra.mxu0 %v1416
        %1939 = vmatprep.subr.bf16.mxu0 %v1421
        %1940 = vmatpush1.bf16.msra.mxu0 %v1420
        %1941 = vmatprep.subr.bf16.mxu0 %v1425
        %1942 = vmatpush1.bf16.msra.mxu0 %v1424
        %1943 = vmatprep.subr.bf16.mxu0 %v1429
        %1944 = vmatpush1.bf16.msra.mxu0 %v1428
        %1945 = vmatprep.subr.bf16.mxu0 %v1433
        %1946 = vmatpush1.bf16.msra.mxu0 %v1432
        %1947 = vmatprep.subr.bf16.mxu0 %v1437
        %1948 = vmatpush1.bf16.msra.mxu0 %v1436
        %1949 = vmatprep.subr.bf16.mxu0 %v1441
        %1950 = vmatpush1.bf16.msra.mxu0 %v1440
        %1951 = vmatprep.subr.bf16.mxu0 %v1445
        %1952 = vmatpush1.bf16.msra.mxu0 %v1444
        %1953 = vmatprep.subr.bf16.mxu0 %v1449
        %1954 = vmatpush1.bf16.msra.mxu0 %v1448
        %1955 = vmatprep.subr.bf16.mxu0 %v1453
        %1956 = vmatpush1.bf16.msra.mxu0 %v1452
        %1957 = vmatprep.subr.bf16.mxu0 %v1457
        %1958 = vmatpush1.bf16.msra.mxu0 %v1456
        %1959 = vmatprep.subr.bf16.mxu0 %v1461
        %1960 = vmatpush1.bf16.msra.mxu0 %v1460
        %1961 = vmatprep.mubr.bf16.mxu0 %v771
        %1962 = vmatmul.mubr.bf16.gmra.mrb[0].mxu0 %v770
        %v1963 = vpop.f32.mrb[0].mxu0
        %v1964 = vadd.f32 %v1851, %v1963
        %v1965 = vpop.f32.mrb[0].mxu0
        %v1966 = vadd.f32 %v1853, %v1965
        %v1967 = vpop.f32.mrb[0].mxu0
        %v1968 = vadd.f32 %v1855, %v1967
        %v1969 = vpop.f32.mrb[0].mxu0
        %v1970 = vadd.f32 %v1857, %v1969
        %1971 = vmatprep.mubr.bf16.mxu0 %v775
        %1972 = vmatmul.mubr.bf16.gmra.mrb[0].mxu0 %v774
        %v1973 = vpop.f32.mrb[0].mxu0
        %v1974 = vadd.f32 %v1861, %v1973
        %v1975 = vpop.f32.mrb[0].mxu0
        %v1976 = vadd.f32 %v1863, %v1975
        %v1977 = vpop.f32.mrb[0].mxu0
        %v1978 = vadd.f32 %v1865, %v1977
        %v1979 = vpop.f32.mrb[0].mxu0
        %v1980 = vadd.f32 %v1867, %v1979
        %1981 = vmatprep.mubr.bf16.mxu0 %v779
        %1982 = vmatmul.mubr.bf16.gmra.mrb[0].mxu0 %v778
        %v1983 = vpop.f32.mrb[0].mxu0
        %v1984 = vadd.f32 %v1871, %v1983
        %v1985 = vpop.f32.mrb[0].mxu0
        %v1986 = vadd.f32 %v1873, %v1985
        %v1987 = vpop.f32.mrb[0].mxu0
        %v1988 = vadd.f32 %v1875, %v1987
        %v1989 = vpop.f32.mrb[0].mxu0
        %v1990 = vadd.f32 %v1877, %v1989
        %1991 = vmatprep.mubr.bf16.mxu0 %v783
        %1992 = vmatmul.mubr.bf16.gmra.mrb[0].mxu0 %v782
        %v1993 = vpop.f32.mrb[0].mxu0
        %v1994 = vadd.f32 %v1881, %v1993
        %v1995 = vpop.f32.mrb[0].mxu0
        %v1996 = vadd.f32 %v1883, %v1995
        %v1997 = vpop.f32.mrb[0].mxu0
        %v1998 = vadd.f32 %v1885, %v1997
        %v1999 = vpop.f32.mrb[0].mxu0
        %v2000 = vadd.f32 %v1887, %v1999
        %2001 = vmatprep.mubr.bf16.mxu0 %v787
        %2002 = vmatmul.mubr.bf16.gmra.mrb[0].mxu0 %v786
        %v2003 = vpop.f32.mrb[0].mxu0
        %v2004 = vadd.f32 %v1891, %v2003
        %v2005 = vpop.f32.mrb[0].mxu0
        %v2006 = vadd.f32 %v1893, %v2005
        %v2007 = vpop.f32.mrb[0].mxu0
        %v2008 = vadd.f32 %v1895, %v2007
        %v2009 = vpop.f32.mrb[0].mxu0
        %v2010 = vadd.f32 %v1897, %v2009
        %2011 = vmatprep.mubr.bf16.mxu0 %v791
        %2012 = vmatmul.mubr.bf16.gmra.mrb[0].mxu0 %v790
        %v2013 = vpop.f32.mrb[0].mxu0
        %v2014 = vadd.f32 %v1901, %v2013
        %v2015 = vpop.f32.mrb[0].mxu0
        %v2016 = vadd.f32 %v1903, %v2015
        %v2017 = vpop.f32.mrb[0].mxu0
        %v2018 = vadd.f32 %v1905, %v2017
        %v2019 = vpop.f32.mrb[0].mxu0
        %v2020 = vadd.f32 %v1907, %v2019
        %2021 = vmatprep.mubr.bf16.mxu0 %v795
        %2022 = vmatmul.mubr.bf16.gmra.mrb[0].mxu0 %v794
        %v2023 = vpop.f32.mrb[0].mxu0
        %v2024 = vadd.f32 %v1911, %v2023
        %v2025 = vpop.f32.mrb[0].mxu0
        %v2026 = vadd.f32 %v1913, %v2025
        %v2027 = vpop.f32.mrb[0].mxu0
        %v2028 = vadd.f32 %v1915, %v2027
        %v2029 = vpop.f32.mrb[0].mxu0
        %v2030 = vadd.f32 %v1917, %v2029
        %2031 = vmatprep.mubr.bf16.mxu0 %v799
        %2032 = vmatmul.mubr.bf16.gmra.mrb[0].mxu0 %v798
        %v2033 = vpop.f32.mrb[0].mxu0
        %v2034 = vadd.f32 %v1921, %v2033
        %v2035 = vpop.f32.mrb[0].mxu0
        %v2036 = vadd.f32 %v1923, %v2035
        %v2037 = vpop.f32.mrb[0].mxu0
        %v2038 = vadd.f32 %v1925, %v2037
        %v2039 = vpop.f32.mrb[0].mxu0
        %v2040 = vadd.f32 %v1927, %v2039
        %2041 = vdwg.mxu0
        %v2042 = vmax.f32 %v1738, 0.0
        %v2043 = vmax.f32 %v1740, 0.0
        %v2044 = vmax.f32 %v1964, 0.0
        %v2045 = vmax.f32 %v1966, 0.0
        %v2046 = vmax.f32 %v1742, 0.0
        %v2047 = vmax.f32 %v1744, 0.0
        %v2048 = vmax.f32 %v1968, 0.0
        %v2049 = vmax.f32 %v1970, 0.0
        %v2050 = vmax.f32 %v1748, 0.0
        %v2051 = vmax.f32 %v1750, 0.0
        %v2052 = vmax.f32 %v1974, 0.0
        %v2053 = vmax.f32 %v1976, 0.0
        %v2054 = vmax.f32 %v1752, 0.0
        %v2055 = vmax.f32 %v1754, 0.0
        %v2056 = vmax.f32 %v1978, 0.0
        %v2057 = vmax.f32 %v1980, 0.0
        %v2058 = vmax.f32 %v1758, 0.0
        %v2059 = vmax.f32 %v1760, 0.0
        %v2060 = vmax.f32 %v1984, 0.0
        %v2061 = vmax.f32 %v1986, 0.0
        %v2062 = vmax.f32 %v1762, 0.0
        %v2063 = vmax.f32 %v1764, 0.0
        %v2064 = vmax.f32 %v1988, 0.0
        %v2065 = vmax.f32 %v1990, 0.0
        %v2066 = vmax.f32 %v1768, 0.0
        %v2067 = vmax.f32 %v1770, 0.0
        %v2068 = vmax.f32 %v1994, 0.0
        %v2069 = vmax.f32 %v1996, 0.0
        %v2070 = vmax.f32 %v1772, 0.0
        %v2071 = vmax.f32 %v1774, 0.0
        %v2072 = vmax.f32 %v1998, 0.0
        %v2073 = vmax.f32 %v2000, 0.0
        %v2074 = vmax.f32 %v1778, 0.0
        %v2075 = vmax.f32 %v1780, 0.0
        %v2076 = vmax.f32 %v2004, 0.0
        %v2077 = vmax.f32 %v2006, 0.0
        %v2078 = vmax.f32 %v1782, 0.0
        %v2079 = vmax.f32 %v1784, 0.0
        %v2080 = vmax.f32 %v2008, 0.0
        %v2081 = vmax.f32 %v2010, 0.0
        %v2082 = vmax.f32 %v1788, 0.0
        %v2083 = vmax.f32 %v1790, 0.0
        %v2084 = vmax.f32 %v2014, 0.0
        %v2085 = vmax.f32 %v2016, 0.0
        %v2086 = vmax.f32 %v1792, 0.0
        %v2087 = vmax.f32 %v1794, 0.0
        %v2088 = vmax.f32 %v2018, 0.0
        %v2089 = vmax.f32 %v2020, 0.0
        %v2090 = vmax.f32 %v1798, 0.0
        %v2091 = vmax.f32 %v1800, 0.0
        %v2092 = vmax.f32 %v2024, 0.0
        %v2093 = vmax.f32 %v2026, 0.0
        %v2094 = vmax.f32 %v1802, 0.0
        %v2095 = vmax.f32 %v1804, 0.0
        %v2096 = vmax.f32 %v2028, 0.0
        %v2097 = vmax.f32 %v2030, 0.0
        %v2098 = vmax.f32 %v1808, 0.0
        %v2099 = vmax.f32 %v1810, 0.0
        %v2100 = vmax.f32 %v2034, 0.0
        %v2101 = vmax.f32 %v2036, 0.0
        %v2102 = vmax.f32 %v1812, 0.0
        %v2103 = vmax.f32 %v1814, 0.0
        %v2104 = vmax.f32 %v2038, 0.0
        %v2105 = vmax.f32 %v2040, 0.0
        %v2106 = vpack.c.bf16 %v2046, %v2042
        %v2107 = vpack.c.bf16 %v2047, %v2043
        %v2108 = vpack.c.bf16 %v2048, %v2044
        %v2109 = vpack.c.bf16 %v2049, %v2045
        %v2110 = vpack.c.bf16 %v2054, %v2050
        %v2111 = vpack.c.bf16 %v2055, %v2051
        %v2112 = vpack.c.bf16 %v2056, %v2052
        %v2113 = vpack.c.bf16 %v2057, %v2053
        %v2114 = vpack.c.bf16 %v2062, %v2058
        %v2115 = vpack.c.bf16 %v2063, %v2059
        %v2116 = vpack.c.bf16 %v2064, %v2060
        %v2117 = vpack.c.bf16 %v2065, %v2061
        %v2118 = vpack.c.bf16 %v2070, %v2066
        %v2119 = vpack.c.bf16 %v2071, %v2067
        %v2120 = vpack.c.bf16 %v2072, %v2068
        %v2121 = vpack.c.bf16 %v2073, %v2069
        %v2122 = vpack.c.bf16 %v2078, %v2074
        %v2123 = vpack.c.bf16 %v2079, %v2075
        %v2124 = vpack.c.bf16 %v2080, %v2076
        %v2125 = vpack.c.bf16 %v2081, %v2077
        %v2126 = vpack.c.bf16 %v2086, %v2082
        %v2127 = vpack.c.bf16 %v2087, %v2083
        %v2128 = vpack.c.bf16 %v2088, %v2084
        %v2129 = vpack.c.bf16 %v2089, %v2085
        %v2130 = vpack.c.bf16 %v2094, %v2090
        %v2131 = vpack.c.bf16 %v2095, %v2091
        %v2132 = vpack.c.bf16 %v2096, %v2092
        %v2133 = vpack.c.bf16 %v2097, %v2093
        %v2134 = vpack.c.bf16 %v2102, %v2098
        %v2135 = vpack.c.bf16 %v2103, %v2099
        %v2136 = vpack.c.bf16 %v2104, %v2100
        %v2137 = vpack.c.bf16 %v2105, %v2101
        %v2138 = vld [vmem:[#allocation5] sm:$0xff]
        %v2139 = vld [vmem:[#allocation5 + $0x8] sm:$0xff]
        %v2140 = vld [vmem:[#allocation5 + $0x10] sm:$0xff]
        %v2141 = vld [vmem:[#allocation5 + $0x18] sm:$0xff]
        %v2142 = vld [vmem:[#allocation5 + $0x20] sm:$0xff]
        %v2143 = vld [vmem:[#allocation5 + $0x28] sm:$0xff]
        %v2144 = vld [vmem:[#allocation5 + $0x30] sm:$0xff]
        %v2145 = vld [vmem:[#allocation5 + $0x38] sm:$0xff]
        %v2146 = vld [vmem:[#allocation5 + $0x40] sm:$0xff]
        %v2147 = vld [vmem:[#allocation5 + $0x48] sm:$0xff]
        %v2148 = vld [vmem:[#allocation5 + $0x50] sm:$0xff]
        %v2149 = vld [vmem:[#allocation5 + $0x58] sm:$0xff]
        %v2150 = vld [vmem:[#allocation5 + $0x60] sm:$0xff]
        %v2151 = vld [vmem:[#allocation5 + $0x68] sm:$0xff]
        %v2152 = vld [vmem:[#allocation5 + $0x70] sm:$0xff]
        %v2153 = vld [vmem:[#allocation5 + $0x78] sm:$0xff]
        %v2154 = vld [vmem:[#allocation5 + $0x80] sm:$0xff]
        %v2155 = vld [vmem:[#allocation5 + $0x88] sm:$0xff]
        %v2156 = vld [vmem:[#allocation5 + $0x90] sm:$0xff]
        %v2157 = vld [vmem:[#allocation5 + $0x98] sm:$0xff]
        %v2158 = vld [vmem:[#allocation5 + $0xa0] sm:$0xff]
        %v2159 = vld [vmem:[#allocation5 + $0xa8] sm:$0xff]
        %v2160 = vld [vmem:[#allocation5 + $0xb0] sm:$0xff]
        %v2161 = vld [vmem:[#allocation5 + $0xb8] sm:$0xff]
        %v2162 = vld [vmem:[#allocation5 + $0xc0] sm:$0xff]
        %v2163 = vld [vmem:[#allocation5 + $0xc8] sm:$0xff]
        %v2164 = vld [vmem:[#allocation5 + $0xd0] sm:$0xff]
        %v2165 = vld [vmem:[#allocation5 + $0xd8] sm:$0xff]
        %v2166 = vld [vmem:[#allocation5 + $0xe0] sm:$0xff]
        %v2167 = vld [vmem:[#allocation5 + $0xe8] sm:$0xff]
        %v2168 = vld [vmem:[#allocation5 + $0xf0] sm:$0xff]
        %v2169 = vld [vmem:[#allocation5 + $0xf8] sm:$0xff]
        %v2170 = vld [vmem:[#allocation5 + $0x100] sm:$0xff]
        %v2171 = vld [vmem:[#allocation5 + $0x108] sm:$0xff]
        %v2172 = vld [vmem:[#allocation5 + $0x110] sm:$0xff]
        %v2173 = vld [vmem:[#allocation5 + $0x118] sm:$0xff]
        %v2174 = vld [vmem:[#allocation5 + $0x120] sm:$0xff]
        %v2175 = vld [vmem:[#allocation5 + $0x128] sm:$0xff]
        %v2176 = vld [vmem:[#allocation5 + $0x130] sm:$0xff]
        %v2177 = vld [vmem:[#allocation5 + $0x138] sm:$0xff]
        %v2178 = vld [vmem:[#allocation5 + $0x140] sm:$0xff]
        %v2179 = vld [vmem:[#allocation5 + $0x148] sm:$0xff]
        %v2180 = vld [vmem:[#allocation5 + $0x150] sm:$0xff]
        %v2181 = vld [vmem:[#allocation5 + $0x158] sm:$0xff]
        %v2182 = vld [vmem:[#allocation5 + $0x160] sm:$0xff]
        %v2183 = vld [vmem:[#allocation5 + $0x168] sm:$0xff]
        %v2184 = vld [vmem:[#allocation5 + $0x170] sm:$0xff]
        %v2185 = vld [vmem:[#allocation5 + $0x178] sm:$0xff]
        %v2186 = vld [vmem:[#allocation5 + $0x180] sm:$0xff]
        %v2187 = vld [vmem:[#allocation5 + $0x188] sm:$0xff]
        %v2188 = vld [vmem:[#allocation5 + $0x190] sm:$0xff]
        %v2189 = vld [vmem:[#allocation5 + $0x198] sm:$0xff]
        %v2190 = vld [vmem:[#allocation5 + $0x1a0] sm:$0xff]
        %v2191 = vld [vmem:[#allocation5 + $0x1a8] sm:$0xff]
        %v2192 = vld [vmem:[#allocation5 + $0x1b0] sm:$0xff]
        %v2193 = vld [vmem:[#allocation5 + $0x1b8] sm:$0xff]
        %v2194 = vld [vmem:[#allocation5 + $0x1c0] sm:$0xff]
        %v2195 = vld [vmem:[#allocation5 + $0x1c8] sm:$0xff]
        %v2196 = vld [vmem:[#allocation5 + $0x1d0] sm:$0xff]
        %v2197 = vld [vmem:[#allocation5 + $0x1d8] sm:$0xff]
        %v2198 = vld [vmem:[#allocation5 + $0x1e0] sm:$0xff]
        %v2199 = vld [vmem:[#allocation5 + $0x1e8] sm:$0xff]
        %v2200 = vld [vmem:[#allocation5 + $0x1f0] sm:$0xff]
        %v2201 = vld [vmem:[#allocation5 + $0x1f8] sm:$0xff]
        %v2202 = vld [vmem:[%s6] sm:$0x3]
        %v2204 = vlaneseq
        %v2205 = vshrl.u32 %v2204, 7
        %v2206 = vsub.s32 0, %v2205
        %v2207 = vrot.slane %v2202, %v2206
        %v2208 = vlaneseq
        %v2209 = vshrl.u32 %v2208, 7
        %v2210 = vsub.s32 1, %v2209
        %v2211 = vrot.slane %v2202, %v2210
        %v2278 = vunpack.c.l.b16 %v2138
        %v2279 = vunpack.c.h.b16 %v2138
        %v2280 = vunpack.c.l.b16 %v2139
        %v2281 = vunpack.c.h.b16 %v2139
        %v2282 = vunpack.c.l.b16 %v2140
        %v2283 = vunpack.c.h.b16 %v2140
        %v2284 = vunpack.c.l.b16 %v2141
        %v2285 = vunpack.c.h.b16 %v2141
        %v2286 = vunpack.c.l.b16 %v2142
        %v2287 = vunpack.c.h.b16 %v2142
        %v2288 = vunpack.c.l.b16 %v2143
        %v2289 = vunpack.c.h.b16 %v2143
        %v2290 = vunpack.c.l.b16 %v2144
        %v2291 = vunpack.c.h.b16 %v2144
        %v2292 = vunpack.c.l.b16 %v2145
        %v2293 = vunpack.c.h.b16 %v2145
        %v2294 = vunpack.c.l.b16 %v2146
        %v2295 = vunpack.c.h.b16 %v2146
        %v2296 = vunpack.c.l.b16 %v2147
        %v2297 = vunpack.c.h.b16 %v2147
        %v2298 = vunpack.c.l.b16 %v2148
        %v2299 = vunpack.c.h.b16 %v2148
        %v2300 = vunpack.c.l.b16 %v2149
        %v2301 = vunpack.c.h.b16 %v2149
        %v2302 = vunpack.c.l.b16 %v2150
        %v2303 = vunpack.c.h.b16 %v2150
        %v2304 = vunpack.c.l.b16 %v2151
        %v2305 = vunpack.c.h.b16 %v2151
        %v2306 = vunpack.c.l.b16 %v2152
        %v2307 = vunpack.c.h.b16 %v2152
        %v2308 = vunpack.c.l.b16 %v2153
        %v2309 = vunpack.c.h.b16 %v2153
        %v2310 = vunpack.c.l.b16 %v2154
        %v2311 = vunpack.c.h.b16 %v2154
        %v2312 = vunpack.c.l.b16 %v2155
        %v2313 = vunpack.c.h.b16 %v2155
        %v2314 = vunpack.c.l.b16 %v2156
        %v2315 = vunpack.c.h.b16 %v2156
        %v2316 = vunpack.c.l.b16 %v2157
        %v2317 = vunpack.c.h.b16 %v2157
        %v2318 = vunpack.c.l.b16 %v2158
        %v2319 = vunpack.c.h.b16 %v2158
        %v2320 = vunpack.c.l.b16 %v2159
        %v2321 = vunpack.c.h.b16 %v2159
        %v2322 = vunpack.c.l.b16 %v2160
        %v2323 = vunpack.c.h.b16 %v2160
        %v2324 = vunpack.c.l.b16 %v2161
        %v2325 = vunpack.c.h.b16 %v2161
        %v2326 = vunpack.c.l.b16 %v2162
        %v2327 = vunpack.c.h.b16 %v2162
        %v2328 = vunpack.c.l.b16 %v2163
        %v2329 = vunpack.c.h.b16 %v2163
        %v2330 = vunpack.c.l.b16 %v2164
        %v2331 = vunpack.c.h.b16 %v2164
        %v2332 = vunpack.c.l.b16 %v2165
        %v2333 = vunpack.c.h.b16 %v2165
        %v2334 = vunpack.c.l.b16 %v2166
        %v2335 = vunpack.c.h.b16 %v2166
        %v2336 = vunpack.c.l.b16 %v2167
        %v2337 = vunpack.c.h.b16 %v2167
        %v2338 = vunpack.c.l.b16 %v2168
        %v2339 = vunpack.c.h.b16 %v2168
        %v2340 = vunpack.c.l.b16 %v2169
        %v2341 = vunpack.c.h.b16 %v2169
        %v2342 = vunpack.c.l.b16 %v2170
        %v2343 = vunpack.c.h.b16 %v2170
        %v2344 = vunpack.c.l.b16 %v2171
        %v2345 = vunpack.c.h.b16 %v2171
        %v2346 = vunpack.c.l.b16 %v2172
        %v2347 = vunpack.c.h.b16 %v2172
        %v2348 = vunpack.c.l.b16 %v2173
        %v2349 = vunpack.c.h.b16 %v2173
        %v2350 = vunpack.c.l.b16 %v2174
        %v2351 = vunpack.c.h.b16 %v2174
        %v2352 = vunpack.c.l.b16 %v2175
        %v2353 = vunpack.c.h.b16 %v2175
        %v2354 = vunpack.c.l.b16 %v2176
        %v2355 = vunpack.c.h.b16 %v2176
        %v2356 = vunpack.c.l.b16 %v2177
        %v2357 = vunpack.c.h.b16 %v2177
        %v2358 = vunpack.c.l.b16 %v2178
        %v2359 = vunpack.c.h.b16 %v2178
        %v2360 = vunpack.c.l.b16 %v2179
        %v2361 = vunpack.c.h.b16 %v2179
        %v2362 = vunpack.c.l.b16 %v2180
        %v2363 = vunpack.c.h.b16 %v2180
        %v2364 = vunpack.c.l.b16 %v2181
        %v2365 = vunpack.c.h.b16 %v2181
        %v2366 = vunpack.c.l.b16 %v2182
        %v2367 = vunpack.c.h.b16 %v2182
        %v2368 = vunpack.c.l.b16 %v2183
        %v2369 = vunpack.c.h.b16 %v2183
        %v2370 = vunpack.c.l.b16 %v2184
        %v2371 = vunpack.c.h.b16 %v2184
        %v2372 = vunpack.c.l.b16 %v2185
        %v2373 = vunpack.c.h.b16 %v2185
        %v2374 = vunpack.c.l.b16 %v2186
        %v2375 = vunpack.c.h.b16 %v2186
        %v2376 = vunpack.c.l.b16 %v2187
        %v2377 = vunpack.c.h.b16 %v2187
        %v2378 = vunpack.c.l.b16 %v2188
        %v2379 = vunpack.c.h.b16 %v2188
        %v2380 = vunpack.c.l.b16 %v2189
        %v2381 = vunpack.c.h.b16 %v2189
        %v2382 = vunpack.c.l.b16 %v2190
        %v2383 = vunpack.c.h.b16 %v2190
        %v2384 = vunpack.c.l.b16 %v2191
        %v2385 = vunpack.c.h.b16 %v2191
        %v2386 = vunpack.c.l.b16 %v2192
        %v2387 = vunpack.c.h.b16 %v2192
        %v2388 = vunpack.c.l.b16 %v2193
        %v2389 = vunpack.c.h.b16 %v2193
        %v2390 = vunpack.c.l.b16 %v2194
        %v2391 = vunpack.c.h.b16 %v2194
        %v2392 = vunpack.c.l.b16 %v2195
        %v2393 = vunpack.c.h.b16 %v2195
        %v2394 = vunpack.c.l.b16 %v2196
        %v2395 = vunpack.c.h.b16 %v2196
        %v2396 = vunpack.c.l.b16 %v2197
        %v2397 = vunpack.c.h.b16 %v2197
        %v2398 = vunpack.c.l.b16 %v2198
        %v2399 = vunpack.c.h.b16 %v2198
        %v2400 = vunpack.c.l.b16 %v2199
        %v2401 = vunpack.c.h.b16 %v2199
        %v2402 = vunpack.c.l.b16 %v2200
        %v2403 = vunpack.c.h.b16 %v2200
        %v2404 = vunpack.c.l.b16 %v2201
        %v2405 = vunpack.c.h.b16 %v2201
        %v2406 = vpack.c.b16 %v2280, %v2278
        %v2407 = vpack.c.b16 %v2281, %v2279
        %v2408 = vpack.c.b16 %v2284, %v2282
        %v2409 = vpack.c.b16 %v2285, %v2283
        %v2410 = vpack.c.b16 %v2288, %v2286
        %v2411 = vpack.c.b16 %v2289, %v2287
        %v2412 = vpack.c.b16 %v2292, %v2290
        %v2413 = vpack.c.b16 %v2293, %v2291
        %v2414 = vpack.c.b16 %v2296, %v2294
        %v2415 = vpack.c.b16 %v2297, %v2295
        %v2416 = vpack.c.b16 %v2300, %v2298
        %v2417 = vpack.c.b16 %v2301, %v2299
        %v2418 = vpack.c.b16 %v2304, %v2302
        %v2419 = vpack.c.b16 %v2305, %v2303
        %v2420 = vpack.c.b16 %v2308, %v2306
        %v2421 = vpack.c.b16 %v2309, %v2307
        %v2422 = vpack.c.b16 %v2312, %v2310
        %v2423 = vpack.c.b16 %v2313, %v2311
        %v2424 = vpack.c.b16 %v2316, %v2314
        %v2425 = vpack.c.b16 %v2317, %v2315
        %v2426 = vpack.c.b16 %v2320, %v2318
        %v2427 = vpack.c.b16 %v2321, %v2319
        %v2428 = vpack.c.b16 %v2324, %v2322
        %v2429 = vpack.c.b16 %v2325, %v2323
        %v2430 = vpack.c.b16 %v2328, %v2326
        %v2431 = vpack.c.b16 %v2329, %v2327
        %v2432 = vpack.c.b16 %v2332, %v2330
        %v2433 = vpack.c.b16 %v2333, %v2331
        %v2434 = vpack.c.b16 %v2336, %v2334
        %v2435 = vpack.c.b16 %v2337, %v2335
        %v2436 = vpack.c.b16 %v2340, %v2338
        %v2437 = vpack.c.b16 %v2341, %v2339
        %v2438 = vpack.c.b16 %v2344, %v2342
        %v2439 = vpack.c.b16 %v2345, %v2343
        %v2440 = vpack.c.b16 %v2348, %v2346
        %v2441 = vpack.c.b16 %v2349, %v2347
        %v2442 = vpack.c.b16 %v2352, %v2350
        %v2443 = vpack.c.b16 %v2353, %v2351
        %v2444 = vpack.c.b16 %v2356, %v2354
        %v2445 = vpack.c.b16 %v2357, %v2355
        %v2446 = vpack.c.b16 %v2360, %v2358
        %v2447 = vpack.c.b16 %v2361, %v2359
        %v2448 = vpack.c.b16 %v2364, %v2362
        %v2449 = vpack.c.b16 %v2365, %v2363
        %v2450 = vpack.c.b16 %v2368, %v2366
        %v2451 = vpack.c.b16 %v2369, %v2367
        %v2452 = vpack.c.b16 %v2372, %v2370
        %v2453 = vpack.c.b16 %v2373, %v2371
        %v2454 = vpack.c.b16 %v2376, %v2374
        %v2455 = vpack.c.b16 %v2377, %v2375
        %v2456 = vpack.c.b16 %v2380, %v2378
        %v2457 = vpack.c.b16 %v2381, %v2379
        %v2458 = vpack.c.b16 %v2384, %v2382
        %v2459 = vpack.c.b16 %v2385, %v2383
        %v2460 = vpack.c.b16 %v2388, %v2386
        %v2461 = vpack.c.b16 %v2389, %v2387
        %v2462 = vpack.c.b16 %v2392, %v2390
        %v2463 = vpack.c.b16 %v2393, %v2391
        %v2464 = vpack.c.b16 %v2396, %v2394
        %v2465 = vpack.c.b16 %v2397, %v2395
        %v2466 = vpack.c.b16 %v2400, %v2398
        %v2467 = vpack.c.b16 %v2401, %v2399
        %v2468 = vpack.c.b16 %v2404, %v2402
        %v2469 = vpack.c.b16 %v2405, %v2403
        %2534 = vmatprep.subr.bf16.mxu0 %v2407
        %2535 = vmatpush1.bf16.msra.mxu0 %v2406
        %2536 = vmatprep.subr.bf16.mxu0 %v2409
        %2537 = vmatpush1.bf16.msra.mxu0 %v2408
        %2538 = vmatprep.subr.bf16.mxu0 %v2411
        %2539 = vmatpush1.bf16.msra.mxu0 %v2410
        %2540 = vmatprep.subr.bf16.mxu0 %v2413
        %2541 = vmatpush1.bf16.msra.mxu0 %v2412
        %2542 = vmatprep.subr.bf16.mxu0 %v2415
        %2543 = vmatpush1.bf16.msra.mxu0 %v2414
        %2544 = vmatprep.subr.bf16.mxu0 %v2417
        %2545 = vmatpush1.bf16.msra.mxu0 %v2416
        %2546 = vmatprep.subr.bf16.mxu0 %v2419
        %2547 = vmatpush1.bf16.msra.mxu0 %v2418
        %2548 = vmatprep.subr.bf16.mxu0 %v2421
        %2549 = vmatpush1.bf16.msra.mxu0 %v2420
        %2550 = vmatprep.subr.bf16.mxu0 %v2423
        %2551 = vmatpush1.bf16.msra.mxu0 %v2422
        %2552 = vmatprep.subr.bf16.mxu0 %v2425
        %2553 = vmatpush1.bf16.msra.mxu0 %v2424
        %2554 = vmatprep.subr.bf16.mxu0 %v2427
        %2555 = vmatpush1.bf16.msra.mxu0 %v2426
        %2556 = vmatprep.subr.bf16.mxu0 %v2429
        %2557 = vmatpush1.bf16.msra.mxu0 %v2428
        %2558 = vmatprep.subr.bf16.mxu0 %v2431
        %2559 = vmatpush1.bf16.msra.mxu0 %v2430
        %2560 = vmatprep.subr.bf16.mxu0 %v2433
        %2561 = vmatpush1.bf16.msra.mxu0 %v2432
        %2562 = vmatprep.subr.bf16.mxu0 %v2435
        %2563 = vmatpush1.bf16.msra.mxu0 %v2434
        %2564 = vmatprep.subr.bf16.mxu0 %v2437
        %2565 = vmatpush1.bf16.msra.mxu0 %v2436
        %2566 = vmatprep.mubr.bf16.mxu0 %v2107
        %2567 = vmatmul.mubr.bf16.gmra.mrb[0].mxu0 %v2106
        %v2568 = vpop.f32.mrb[0].mxu0
        %v2569 = vadd.f32 %v2207, %v2568
        %v2570 = vpop.f32.mrb[0].mxu0
        %v2571 = vadd.f32 %v2211, %v2570
        %v2572 = vpop.f32.mrb[0].mxu0
        %v2573 = vadd.f32 %v2207, %v2572
        %v2574 = vpop.f32.mrb[0].mxu0
        %v2575 = vadd.f32 %v2211, %v2574
        %2576 = vmatprep.mubr.bf16.mxu0 %v2111
        %2577 = vmatmul.mubr.bf16.gmra.mrb[0].mxu0 %v2110
        %v2578 = vpop.f32.mrb[0].mxu0
        %v2579 = vadd.f32 %v2207, %v2578
        %v2580 = vpop.f32.mrb[0].mxu0
        %v2581 = vadd.f32 %v2211, %v2580
        %v2582 = vpop.f32.mrb[0].mxu0
        %v2583 = vadd.f32 %v2207, %v2582
        %v2584 = vpop.f32.mrb[0].mxu0
        %v2585 = vadd.f32 %v2211, %v2584
        %2586 = vmatprep.mubr.bf16.mxu0 %v2115
        %2587 = vmatmul.mubr.bf16.gmra.mrb[0].mxu0 %v2114
        %v2588 = vpop.f32.mrb[0].mxu0
        %v2589 = vadd.f32 %v2207, %v2588
        %v2590 = vpop.f32.mrb[0].mxu0
        %v2591 = vadd.f32 %v2211, %v2590
        %v2592 = vpop.f32.mrb[0].mxu0
        %v2593 = vadd.f32 %v2207, %v2592
        %v2594 = vpop.f32.mrb[0].mxu0
        %v2595 = vadd.f32 %v2211, %v2594
        %2596 = vmatprep.mubr.bf16.mxu0 %v2119
        %2597 = vmatmul.mubr.bf16.gmra.mrb[0].mxu0 %v2118
        %v2598 = vpop.f32.mrb[0].mxu0
        %v2599 = vadd.f32 %v2207, %v2598
        %v2600 = vpop.f32.mrb[0].mxu0
        %v2601 = vadd.f32 %v2211, %v2600
        %v2602 = vpop.f32.mrb[0].mxu0
        %v2603 = vadd.f32 %v2207, %v2602
        %v2604 = vpop.f32.mrb[0].mxu0
        %v2605 = vadd.f32 %v2211, %v2604
        %2606 = vmatprep.mubr.bf16.mxu0 %v2123
        %2607 = vmatmul.mubr.bf16.gmra.mrb[0].mxu0 %v2122
        %v2608 = vpop.f32.mrb[0].mxu0
        %v2609 = vadd.f32 %v2207, %v2608
        %v2610 = vpop.f32.mrb[0].mxu0
        %v2611 = vadd.f32 %v2211, %v2610
        %v2612 = vpop.f32.mrb[0].mxu0
        %v2613 = vadd.f32 %v2207, %v2612
        %v2614 = vpop.f32.mrb[0].mxu0
        %v2615 = vadd.f32 %v2211, %v2614
        %2616 = vmatprep.mubr.bf16.mxu0 %v2127
        %2617 = vmatmul.mubr.bf16.gmra.mrb[0].mxu0 %v2126
        %v2618 = vpop.f32.mrb[0].mxu0
        %v2619 = vadd.f32 %v2207, %v2618
        %v2620 = vpop.f32.mrb[0].mxu0
        %v2621 = vadd.f32 %v2211, %v2620
        %v2622 = vpop.f32.mrb[0].mxu0
        %v2623 = vadd.f32 %v2207, %v2622
        %v2624 = vpop.f32.mrb[0].mxu0
        %v2625 = vadd.f32 %v2211, %v2624
        %2626 = vmatprep.mubr.bf16.mxu0 %v2131
        %2627 = vmatmul.mubr.bf16.gmra.mrb[0].mxu0 %v2130
        %v2628 = vpop.f32.mrb[0].mxu0
        %v2629 = vadd.f32 %v2207, %v2628
        %v2630 = vpop.f32.mrb[0].mxu0
        %v2631 = vadd.f32 %v2211, %v2630
        %v2632 = vpop.f32.mrb[0].mxu0
        %v2633 = vadd.f32 %v2207, %v2632
        %v2634 = vpop.f32.mrb[0].mxu0
        %v2635 = vadd.f32 %v2211, %v2634
        %2636 = vmatprep.mubr.bf16.mxu0 %v2135
        %2637 = vmatmul.mubr.bf16.gmra.mrb[0].mxu0 %v2134
        %v2638 = vpop.f32.mrb[0].mxu0
        %v2639 = vadd.f32 %v2207, %v2638
        %v2640 = vpop.f32.mrb[0].mxu0
        %v2641 = vadd.f32 %v2211, %v2640
        %v2642 = vpop.f32.mrb[0].mxu0
        %v2643 = vadd.f32 %v2207, %v2642
        %v2644 = vpop.f32.mrb[0].mxu0
        %v2645 = vadd.f32 %v2211, %v2644
        %2646 = vdwg.mxu0
        %2647 = vmatprep.subr.bf16.mxu0 %v2439
        %2648 = vmatpush1.bf16.msra.mxu0 %v2438
        %2649 = vmatprep.subr.bf16.mxu0 %v2441
        %2650 = vmatpush1.bf16.msra.mxu0 %v2440
        %2651 = vmatprep.subr.bf16.mxu0 %v2443
        %2652 = vmatpush1.bf16.msra.mxu0 %v2442
        %2653 = vmatprep.subr.bf16.mxu0 %v2445
        %2654 = vmatpush1.bf16.msra.mxu0 %v2444
        %2655 = vmatprep.subr.bf16.mxu0 %v2447
        %2656 = vmatpush1.bf16.msra.mxu0 %v2446
        %2657 = vmatprep.subr.bf16.mxu0 %v2449
        %2658 = vmatpush1.bf16.msra.mxu0 %v2448
        %2659 = vmatprep.subr.bf16.mxu0 %v2451
        %2660 = vmatpush1.bf16.msra.mxu0 %v2450
        %2661 = vmatprep.subr.bf16.mxu0 %v2453
        %2662 = vmatpush1.bf16.msra.mxu0 %v2452
        %2663 = vmatprep.subr.bf16.mxu0 %v2455
        %2664 = vmatpush1.bf16.msra.mxu0 %v2454
        %2665 = vmatprep.subr.bf16.mxu0 %v2457
        %2666 = vmatpush1.bf16.msra.mxu0 %v2456
        %2667 = vmatprep.subr.bf16.mxu0 %v2459
        %2668 = vmatpush1.bf16.msra.mxu0 %v2458
        %2669 = vmatprep.subr.bf16.mxu0 %v2461
        %2670 = vmatpush1.bf16.msra.mxu0 %v2460
        %2671 = vmatprep.subr.bf16.mxu0 %v2463
        %2672 = vmatpush1.bf16.msra.mxu0 %v2462
        %2673 = vmatprep.subr.bf16.mxu0 %v2465
        %2674 = vmatpush1.bf16.msra.mxu0 %v2464
        %2675 = vmatprep.subr.bf16.mxu0 %v2467
        %2676 = vmatpush1.bf16.msra.mxu0 %v2466
        %2677 = vmatprep.subr.bf16.mxu0 %v2469
        %2678 = vmatpush1.bf16.msra.mxu0 %v2468
        %2679 = vmatprep.mubr.bf16.mxu0 %v2109
        %2680 = vmatmul.mubr.bf16.gmra.mrb[0].mxu0 %v2108
        %v2681 = vpop.f32.mrb[0].mxu0
        %v2682 = vadd.f32 %v2569, %v2681
        %v2683 = vpop.f32.mrb[0].mxu0
        %v2684 = vadd.f32 %v2571, %v2683
        %v2685 = vpop.f32.mrb[0].mxu0
        %v2686 = vadd.f32 %v2573, %v2685
        %v2687 = vpop.f32.mrb[0].mxu0
        %v2688 = vadd.f32 %v2575, %v2687
        %2689 = vmatprep.mubr.bf16.mxu0 %v2113
        %2690 = vmatmul.mubr.bf16.gmra.mrb[0].mxu0 %v2112
        %v2691 = vpop.f32.mrb[0].mxu0
        %v2692 = vadd.f32 %v2579, %v2691
        %v2693 = vpop.f32.mrb[0].mxu0
        %v2694 = vadd.f32 %v2581, %v2693
        %v2695 = vpop.f32.mrb[0].mxu0
        %v2696 = vadd.f32 %v2583, %v2695
        %v2697 = vpop.f32.mrb[0].mxu0
        %v2698 = vadd.f32 %v2585, %v2697
        %2699 = vmatprep.mubr.bf16.mxu0 %v2117
        %2700 = vmatmul.mubr.bf16.gmra.mrb[0].mxu0 %v2116
        %v2701 = vpop.f32.mrb[0].mxu0
        %v2702 = vadd.f32 %v2589, %v2701
        %v2703 = vpop.f32.mrb[0].mxu0
        %v2704 = vadd.f32 %v2591, %v2703
        %v2705 = vpop.f32.mrb[0].mxu0
        %v2706 = vadd.f32 %v2593, %v2705
        %v2707 = vpop.f32.mrb[0].mxu0
        %v2708 = vadd.f32 %v2595, %v2707
        %2709 = vmatprep.mubr.bf16.mxu0 %v2121
        %2710 = vmatmul.mubr.bf16.gmra.mrb[0].mxu0 %v2120
        %v2711 = vpop.f32.mrb[0].mxu0
        %v2712 = vadd.f32 %v2599, %v2711
        %v2713 = vpop.f32.mrb[0].mxu0
        %v2714 = vadd.f32 %v2601, %v2713
        %v2715 = vpop.f32.mrb[0].mxu0
        %v2716 = vadd.f32 %v2603, %v2715
        %v2717 = vpop.f32.mrb[0].mxu0
        %v2718 = vadd.f32 %v2605, %v2717
        %2719 = vmatprep.mubr.bf16.mxu0 %v2125
        %2720 = vmatmul.mubr.bf16.gmra.mrb[0].mxu0 %v2124
        %v2721 = vpop.f32.mrb[0].mxu0
        %v2722 = vadd.f32 %v2609, %v2721
        %v2723 = vpop.f32.mrb[0].mxu0
        %v2724 = vadd.f32 %v2611, %v2723
        %v2725 = vpop.f32.mrb[0].mxu0
        %v2726 = vadd.f32 %v2613, %v2725
        %v2727 = vpop.f32.mrb[0].mxu0
        %v2728 = vadd.f32 %v2615, %v2727
        %2729 = vmatprep.mubr.bf16.mxu0 %v2129
        %2730 = vmatmul.mubr.bf16.gmra.mrb[0].mxu0 %v2128
        %v2731 = vpop.f32.mrb[0].mxu0
        %v2732 = vadd.f32 %v2619, %v2731
        %v2733 = vpop.f32.mrb[0].mxu0
        %v2734 = vadd.f32 %v2621, %v2733
        %v2735 = vpop.f32.mrb[0].mxu0
        %v2736 = vadd.f32 %v2623, %v2735
        %v2737 = vpop.f32.mrb[0].mxu0
        %v2738 = vadd.f32 %v2625, %v2737
        %2739 = vmatprep.mubr.bf16.mxu0 %v2133
        %2740 = vmatmul.mubr.bf16.gmra.mrb[0].mxu0 %v2132
        %v2741 = vpop.f32.mrb[0].mxu0
        %v2742 = vadd.f32 %v2629, %v2741
        %v2743 = vpop.f32.mrb[0].mxu0
        %v2744 = vadd.f32 %v2631, %v2743
        %v2745 = vpop.f32.mrb[0].mxu0
        %v2746 = vadd.f32 %v2633, %v2745
        %v2747 = vpop.f32.mrb[0].mxu0
        %v2748 = vadd.f32 %v2635, %v2747
        %2749 = vmatprep.mubr.bf16.mxu0 %v2137
        %2750 = vmatmul.mubr.bf16.gmra.mrb[0].mxu0 %v2136
        %v2751 = vpop.f32.mrb[0].mxu0
        %v2752 = vadd.f32 %v2639, %v2751
        %v2753 = vpop.f32.mrb[0].mxu0
        %v2754 = vadd.f32 %v2641, %v2753
        %v2755 = vpop.f32.mrb[0].mxu0
        %v2756 = vadd.f32 %v2643, %v2755
        %v2757 = vpop.f32.mrb[0].mxu0
        %v2758 = vadd.f32 %v2645, %v2757
        %2759 = vdwg.mxu0
        %2760 = vst [vmem:[%s333] sm:$0xff] %v2682
        %2761 = vst [vmem:[%s333 + $0x8] sm:$0xff] %v2686
        %2762 = vst [vmem:[%s333 + $0x10] sm:$0xff] %v2692
        %2763 = vst [vmem:[%s333 + $0x18] sm:$0xff] %v2696
        %2764 = vst [vmem:[%s333 + $0x20] sm:$0xff] %v2702
        %2765 = vst [vmem:[%s333 + $0x28] sm:$0xff] %v2706
        %2766 = vst [vmem:[%s333 + $0x30] sm:$0xff] %v2712
        %2767 = vst [vmem:[%s333 + $0x38] sm:$0xff] %v2716
        %2768 = vst [vmem:[%s333 + $0x40] sm:$0xff] %v2722
        %2769 = vst [vmem:[%s333 + $0x48] sm:$0xff] %v2726
        %2770 = vst [vmem:[%s333 + $0x50] sm:$0xff] %v2732
        %2771 = vst [vmem:[%s333 + $0x58] sm:$0xff] %v2736
        %2772 = vst [vmem:[%s333 + $0x60] sm:$0xff] %v2742
        %2773 = vst [vmem:[%s333 + $0x68] sm:$0xff] %v2746
        %2774 = vst [vmem:[%s333 + $0x70] sm:$0xff] %v2752
        %2775 = vst [vmem:[%s333 + $0x78] sm:$0xff] %v2756
        %v2776 = vtanh.pop %v2684
        %v2777 = vtanh.pop %v2688
        %v2778 = vtanh.pop %v2694
        %v2779 = vtanh.pop %v2698
        %v2780 = vtanh.pop %v2704
        %v2781 = vtanh.pop %v2708
        %v2782 = vtanh.pop %v2714
        %v2783 = vtanh.pop %v2718
        %v2784 = vtanh.pop %v2724
        %v2785 = vtanh.pop %v2728
        %v2786 = vtanh.pop %v2734
        %v2787 = vtanh.pop %v2738
        %v2788 = vtanh.pop %v2744
        %v2789 = vtanh.pop %v2748
        %v2790 = vtanh.pop %v2754
        %v2791 = vtanh.pop %v2758
        %2792 = vst [vmem:[%s340] sm:$0xff] %v2776
        %2793 = vst [vmem:[%s340 + $0x8] sm:$0xff] %v2777
        %2794 = vst [vmem:[%s340 + $0x10] sm:$0xff] %v2778
        %2795 = vst [vmem:[%s340 + $0x18] sm:$0xff] %v2779
        %2796 = vst [vmem:[%s340 + $0x20] sm:$0xff] %v2780
        %2797 = vst [vmem:[%s340 + $0x28] sm:$0xff] %v2781
        %2798 = vst [vmem:[%s340 + $0x30] sm:$0xff] %v2782
        %2799 = vst [vmem:[%s340 + $0x38] sm:$0xff] %v2783
        %2800 = vst [vmem:[%s340 + $0x40] sm:$0xff] %v2784
        %2801 = vst [vmem:[%s340 + $0x48] sm:$0xff] %v2785
        %2802 = vst [vmem:[%s340 + $0x50] sm:$0xff] %v2786
        %2803 = vst [vmem:[%s340 + $0x58] sm:$0xff] %v2787
        %2804 = vst [vmem:[%s340 + $0x60] sm:$0xff] %v2788
        %2805 = vst [vmem:[%s340 + $0x68] sm:$0xff] %v2789
        %2806 = vst [vmem:[%s340 + $0x70] sm:$0xff] %v2790
        %2807 = vst [vmem:[%s340 + $0x78] sm:$0xff] %v2791
        %s2808 = sand.u32 %s188, 1
        %s2809 = scalar_lea.sflag [#allocation4], %s2808
        %s2810 = sand.u32 %s188, 1
        %s2811 = smul.addr %s2810, 128
        %s2812 = scalar_lea.vmem [#allocation7], %s2811
        %s2813 = sand.u32 %s214, 1
        %s2814 = scalar_lea.sflag [#allocation9], %s2813
        %s2815 = sand.u32 %s214, 1
        %s2816 = smul.addr %s2815, 128
        %s2817 = scalar_lea.vmem [#allocation8], %s2816
        // Predicated region
        $region57: #{state_action_encoder_forward.1} parent=47 // pred_check
          %p2818 = pneg %p198
        $region58: #{state_action_encoder_forward.1} parent=47 // pred_check_branch
          %2820 = sbr.rel (%p2818) target = $region60
        $region59: #{state_action_encoder_forward.1} parent=47 // pred_region
          %s2821 = smul.u32 16, %s28
          %s2823 = ssub.s32 2048, 2048
          %2824 = vsyncadd %s2809, %s2823
          %s2825 = smul.addr %s2821, 128
          %s2826 = scalar_lea.hbm %s7, %s2825
          %s2827 = sshll.u32 %s2812, 4
          %s2828 = int_to_ptr.vmem [resolvable:$true] %s2827
          %2833 = dma.vmem_to_hbm [thread:$0]  %s2828, 2048, %s2826, %s2809, 128, 128, 8
        $region60: #{state_action_encoder_forward.1} parent=47 // pred_fallthru
          _
        // Predicated region
        $region61: #{state_action_encoder_forward.1} parent=47 // pred_check
          %p2834 = pneg %p224
        $region62: #{state_action_encoder_forward.1} parent=47 // pred_check_branch
          %2836 = sbr.rel (%p2834) target = $region64
        $region63: #{state_action_encoder_forward.1} parent=47 // pred_region
          %s2837 = smul.u32 16, %s28
          %s2839 = ssub.s32 2048, 2048
          %2840 = vsyncadd %s2814, %s2839
          %s2841 = smul.addr %s2837, 128
          %s2842 = scalar_lea.hbm %s8, %s2841
          %s2843 = sshll.u32 %s2817, 4
          %s2844 = int_to_ptr.vmem [resolvable:$true] %s2843
          %2849 = dma.vmem_to_hbm [thread:$0]  %s2844, 2048, %s2842, %s2814, 128, 128, 8
        $region64: #{state_action_encoder_forward.1} parent=47 // pred_fallthru
          _
      $region48: #{state_action_encoder_forward.1} parent=5 // pred_fallthru
        _
      %p2850 = scmp.le.s32.totalorder 2, %s23
      // Predicated region
      $region65: #{state_action_encoder_forward.1} parent=5 // pred_check
        %p2851 = pneg %p2850
      $region66: #{state_action_encoder_forward.1} parent=5 // pred_check_branch
        %2853 = sbr.rel (%p2851) target = $region68
      $region67: #{state_action_encoder_forward.1} parent=5 // pred_region
        %s2854 = ssub.s32 %s23, 2
        // Predicated region
        $region69: #{state_action_encoder_forward.1} parent=67 // pred_check
          %p2855 = pneg %p204
        $region70: #{state_action_encoder_forward.1} parent=67 // pred_check_branch
          %2857 = sbr.rel (%p2855) target = $region72
        $region71: #{state_action_encoder_forward.1} parent=67 // pred_region
          %s2858 = sand.u32 %s189, 1
          %s2859 = scalar_lea.sflag [#allocation4], %s2858
          %s2860 = sand.u32 %s189, 1
          %s2861 = smul.addr %s2860, 128
          %s2862 = scalar_lea.vmem [#allocation7], %s2861
          %2863 = dma.done %s2859, 2048
        $region72: #{state_action_encoder_forward.1} parent=67 // pred_fallthru
          _
        // Predicated region
        $region73: #{state_action_encoder_forward.1} parent=67 // pred_check
          %p2864 = pneg %p230
        $region74: #{state_action_encoder_forward.1} parent=67 // pred_check_branch
          %2866 = sbr.rel (%p2864) target = $region76
        $region75: #{state_action_encoder_forward.1} parent=67 // pred_region
          %s2867 = sand.u32 %s215, 1
          %s2868 = scalar_lea.sflag [#allocation9], %s2867
          %s2869 = sand.u32 %s215, 1
          %s2870 = smul.addr %s2869, 128
          %s2871 = scalar_lea.vmem [#allocation8], %s2870
          %2872 = dma.done %s2868, 2048
        $region76: #{state_action_encoder_forward.1} parent=67 // pred_fallthru
          _
      $region68: #{state_action_encoder_forward.1} parent=5 // pred_fallthru
        _
    $region6: #{state_action_encoder_forward.1} parent=1 // loop_footer
      %s27 = sadd.s32 1, %s23
    $region7: #{state_action_encoder_forward.1} parent=1 // loop_footer_branch
      %22 = sbr.rel target = $region3
    $region8: #{state_action_encoder_forward.1} parent=1 // loop_exit
      _
    %2873 = vsyncpa [#allocation3], 1
    %s2874 = scalar_lea.sflag [#allocation3], 1
    %2875 = vsyncpa %s2874, 1
    %2876 = vsyncpa [#allocation6], 1
    %2877 = vsyncpa [#allocation4], 1
    %s2878 = scalar_lea.sflag [#allocation4], 1
    %2879 = vsyncpa %s2878, 1
    %2880 = vsyncpa [#allocation9], 1
    %s2881 = scalar_lea.sflag [#allocation9], 1
    %2882 = vsyncpa %s2881, 1

</llo_original>
